<compile_context>
chip_gen: v5e
topology: v5e:2x2
jax: 0.10.0
libtpu: 0.0.40
codegen_flags: <defaults>
</compile_context>

<pallas_src>
import functools

import jax
import jax.numpy as jnp
from jax import lax
from jax.experimental import pallas as pl
from jax.experimental.pallas import tpu as pltpu


# -----------------------------------------------------------------------------
# Pallas kernels
# -----------------------------------------------------------------------------
def decoder_block_kernel(
    x_ref,
    wq_ref, bq_ref, wk_ref, bk_ref, wv_ref, bv_ref,
    wo_ref, bo_ref,
    ln1g_ref, ln1b_ref,
    w1_ref, b1_ref, w2_ref, b2_ref,
    ln2g_ref, ln2b_ref,
    out_ref,
    *, num_heads,
):
    f32 = jnp.float32
    bf16 = jnp.bfloat16

    x = x_ref[0].astype(f32)                             # (S, D)
    S, D = x.shape
    H = num_heads
    hd = D // H
    scale = 1.0 / (hd ** 0.5)

    # --- batched-head QKV projections (bf16 MXU, f32 accumulate) ---
    xb = jnp.broadcast_to(x.astype(bf16)[None, :, :], (H, S, D))   # (H, S, D)
    q = jnp.einsum('hsk,hkd->hsd', xb, wq_ref[...],
                   preferred_element_type=f32) + bq_ref[...]        # (H, S, hd)
    k = jnp.einsum('hsk,hkd->hsd', xb, wk_ref[...],
                   preferred_element_type=f32) + bk_ref[...]
    v = jnp.einsum('hsk,hkd->hsd', xb, wv_ref[...],
                   preferred_element_type=f32) + bv_ref[...]

    # --- causal scaled-dot-product attention, head axis batched ---
    s = jnp.einsum('hqd,hkd->hqk', q.astype(bf16), k.astype(bf16),
                   preferred_element_type=f32) * scale               # (H, S, S)
    row = lax.broadcasted_iota(jnp.int32, (H, S, S), 1)
    col = lax.broadcasted_iota(jnp.int32, (H, S, S), 2)
    s = jnp.where(col <= row, s, f32(-1e30))
    s = s - jnp.max(s, axis=-1, keepdims=True)
    p = jnp.exp(s)
    p = p * pl.reciprocal(jnp.sum(p, axis=-1, keepdims=True), approx=True)

    attn = jnp.einsum('hqk,hkd->hqd', p.astype(bf16), v.astype(bf16),
                      preferred_element_type=f32)                    # (H, S, hd)

    # --- output projection: per-head partial products, summed over heads ---
    out_h = jnp.einsum('hqd,hdj->hqj', attn.astype(bf16), wo_ref[...],
                       preferred_element_type=f32)                   # (H, S, D)
    attn_out = jnp.sum(out_h, axis=0) + bo_ref[...]                  # (S, D)

    # --- residual + LayerNorm1 (f32) ---
    h1 = x + attn_out
    mu = jnp.mean(h1, axis=-1, keepdims=True)
    var = jnp.mean((h1 - mu) ** 2, axis=-1, keepdims=True)
    h1 = (h1 - mu) * lax.rsqrt(var + 1e-5) * ln1g_ref[...] + ln1b_ref[...]

    # --- feedforward: Linear -> GELU(exact) -> Linear ---
    f = jnp.dot(h1.astype(bf16), w1_ref[...],
                preferred_element_type=f32) + b1_ref[...]
    f = 0.5 * f * (1.0 + lax.erf(f * f32(0.7071067811865476)))
    f = jnp.dot(f.astype(bf16), w2_ref[...],
                preferred_element_type=f32) + b2_ref[...]

    # --- residual + LayerNorm2 (f32) ---
    h2 = h1 + f
    mu2 = jnp.mean(h2, axis=-1, keepdims=True)
    var2 = jnp.mean((h2 - mu2) ** 2, axis=-1, keepdims=True)
    h2 = (h2 - mu2) * lax.rsqrt(var2 + 1e-5) * ln2g_ref[...] + ln2b_ref[...]

    out_ref[0] = h2.astype(out_ref.dtype)


def final_head_kernel(x_ref, g_ref, b_ref, w_ref, out_ref):
    x = x_ref[0].astype(jnp.float32)                     # (S, D)
    mu = jnp.mean(x, axis=-1, keepdims=True)
    var = jnp.mean((x - mu) ** 2, axis=-1, keepdims=True)
    h = (x - mu) * lax.rsqrt(var + 1e-5) * g_ref[...] + b_ref[...]
    logits = jnp.dot(h.astype(jnp.bfloat16), w_ref[...],
                     preferred_element_type=jnp.float32)
    out_ref[0] = logits.astype(out_ref.dtype)


# -----------------------------------------------------------------------------
# Wrappers (pallas_call plumbing)
# -----------------------------------------------------------------------------
def decoder_block(x, p, num_heads):
    B, S, D = x.shape
    F = 4 * D
    H = num_heads
    hd = D // H

    def full(shape):
        return pl.BlockSpec(shape, lambda b, _n=len(shape): (0,) * _n)

    in_specs = [
        pl.BlockSpec((1, S, D), lambda b: (b, 0, 0)),    # x
        full((H, D, hd)), full((H, 1, hd)),              # Wq, bq
        full((H, D, hd)), full((H, 1, hd)),              # Wk, bk
        full((H, D, hd)), full((H, 1, hd)),              # Wv, bv
        full((H, hd, D)), full((1, D)),                  # Wo, bo
        full((1, D)), full((1, D)),                      # ln1 gamma/beta
        full((D, F)), full((1, F)),                      # W1, b1
        full((F, D)), full((1, D)),                      # W2, b2
        full((1, D)), full((1, D)),                      # ln2 gamma/beta
    ]

    return pl.pallas_call(
        functools.partial(decoder_block_kernel, num_heads=num_heads),
        out_shape=jax.ShapeDtypeStruct((B, S, D), jnp.float32),
        grid=(B,),
        in_specs=in_specs,
        out_specs=pl.BlockSpec((1, S, D), lambda b: (b, 0, 0)),
        compiler_params=pltpu.CompilerParams(
            dimension_semantics=("parallel",)),
    )(
        x,
        p["wq"], p["bq"], p["wk"], p["bk"], p["wv"], p["bv"],
        p["wo"], p["bo"],
        p["ln1_g"], p["ln1_b"],
        p["w1"], p["b1"], p["w2"], p["b2"],
        p["ln2_g"], p["ln2_b"],
    )


def final_head(x, ln_g, ln_b, w_out):
    B, S, D = x.shape
    V = w_out.shape[1]

    # Lane-dense vocab tiling: largest multiple-of-128 tile that divides V,
    # falling back to the full (untiled) vocab when V < 128 (toy sizes).
    TV = V
    for cand in (2048, 1024, 512, 256, 128):
        if V % cand == 0:
            TV = cand
            break
    nv = V // TV

    return pl.pallas_call(
        final_head_kernel,
        out_shape=jax.ShapeDtypeStruct((B, S, V), jnp.float32),
        grid=(B, nv),
        in_specs=[
            pl.BlockSpec((1, S, D), lambda b, j: (b, 0, 0)),
            pl.BlockSpec((1, D), lambda b, j: (0, 0)),
            pl.BlockSpec((1, D), lambda b, j: (0, 0)),
            pl.BlockSpec((D, TV), lambda b, j: (0, j)),
        ],
        out_specs=pl.BlockSpec((1, S, TV), lambda b, j: (b, 0, j)),
        compiler_params=pltpu.CompilerParams(
            dimension_semantics=("parallel", "parallel")),
    )(x, ln_g, ln_b, w_out)


# -----------------------------------------------------------------------------
# Parameter init (deterministic, synthetic) + kernel-layout preparation
# -----------------------------------------------------------------------------
def init_params(key, vocab_size, max_seq_len, embed_dim, num_layers):
    D, F = embed_dim, 4 * embed_dim
    keys = jax.random.split(key, 3 + num_layers)
    params = {
        "tok_emb": jax.random.normal(keys[0], (vocab_size, D), jnp.float32) * 0.02,
        "pos_emb": jax.random.normal(keys[1], (max_seq_len, D), jnp.float32) * 0.02,
        "layers": [],
        "lnf_g": jnp.ones((1, D), jnp.float32),
        "lnf_b": jnp.zeros((1, D), jnp.float32),
        # independent key for the output projection (init hygiene)
        "w_out": jax.random.normal(keys[2], (D, vocab_size), jnp.float32) * 0.02,
    }
    for li in range(num_layers):
        lk = jax.random.split(keys[3 + li], 8)
        layer = {
            # linear weights pre-transposed: (in, out)
            "wq": jax.random.normal(lk[0], (D, D), jnp.float32) * 0.02,
            "bq": jnp.zeros((1, D), jnp.float32),
            "wk": jax.random.normal(lk[1], (D, D), jnp.float32) * 0.02,
            "bk": jnp.zeros((1, D), jnp.float32),
            "wv": jax.random.normal(lk[2], (D, D), jnp.float32) * 0.02,
            "bv": jnp.zeros((1, D), jnp.float32),
            "wo": jax.random.normal(lk[3], (D, D), jnp.float32) * 0.02,
            "bo": jnp.zeros((1, D), jnp.float32),
            "ln1_g": jnp.ones((1, D), jnp.float32),
            "ln1_b": jnp.zeros((1, D), jnp.float32),
            "w1": jax.random.normal(lk[4], (D, F), jnp.float32) * 0.02,
            "b1": jnp.zeros((1, F), jnp.float32),
            "w2": jax.random.normal(lk[5], (F, D), jnp.float32) * 0.02,
            "b2": jnp.zeros((1, D), jnp.float32),
            "ln2_g": jnp.ones((1, D), jnp.float32),
            "ln2_b": jnp.zeros((1, D), jnp.float32),
        }
        params["layers"].append(layer)
    return params


def prepare_params(params, num_heads):
    """One-time host-side conversion to kernel-friendly layouts:
    attention weights reshaped to per-head batched (H, D, hd)/(H, hd, D),
    matmul weights cast to bf16; biases / LayerNorm params stay f32."""
    bf16 = jnp.bfloat16
    D = params["tok_emb"].shape[1]
    H = num_heads
    hd = D // H

    def split_heads_in(w):   # (D, H*hd) -> (H, D, hd)
        return jnp.transpose(w.reshape(D, H, hd), (1, 0, 2)).astype(bf16)

    def split_heads_bias(b):  # (1, H*hd) -> (H, 1, hd)
        return b.reshape(H, hd)[:, None, :]

    out = {
        "tok_emb": params["tok_emb"],
        "pos_emb": params["pos_emb"],
        "lnf_g": params["lnf_g"],
        "lnf_b": params["lnf_b"],
        "w_out": params["w_out"].astype(bf16),
        "layers": [],
    }
    for p in params["layers"]:
        out["layers"].append({
            "wq": split_heads_in(p["wq"]), "bq": split_heads_bias(p["bq"]),
            "wk": split_heads_in(p["wk"]), "bk": split_heads_bias(p["bk"]),
            "wv": split_heads_in(p["wv"]), "bv": split_heads_bias(p["bv"]),
            "wo": p["wo"].reshape(H, hd, D).astype(bf16),   # (H*hd, D) -> (H, hd, D)
            "bo": p["bo"],
            "ln1_g": p["ln1_g"], "ln1_b": p["ln1_b"],
            "w1": p["w1"].astype(bf16), "b1": p["b1"],
            "w2": p["w2"].astype(bf16), "b2": p["b2"],
            "ln2_g": p["ln2_g"], "ln2_b": p["ln2_b"],
        })
    return out


def gpt_forward(token_ids, kparams, num_heads):
    B, S = token_ids.shape
    # Embedding lookup + positional add (glue, plain JAX gather).
    x = jnp.take(kparams["tok_emb"], token_ids, axis=0)        # (B, S, D)
    x = x + kparams["pos_emb"][:S][None, :, :]
    for layer in kparams["layers"]:
        x = decoder_block(x, layer, num_heads)
    logits = final_head(x, kparams["lnf_g"], kparams["lnf_b"], kparams["w_out"])
    return logits


# -----------------------------------------------------------------------------
if __name__ == "__main__":
    VOCAB = 64
    MAX_SEQ = 16
    D = 32
    HEADS = 4
    LAYERS = 2
    B, S = 2, 8

    key = jax.random.PRNGKey(0)
    pkey, xkey = jax.random.split(key)
    params = init_params(pkey, VOCAB, MAX_SEQ, D, LAYERS)
    kparams = prepare_params(params, HEADS)
    token_ids = jax.random.randint(xkey, (B, S), 0, VOCAB, dtype=jnp.int32)

    logits = gpt_forward(token_ids, kparams, HEADS)
    logits = jax.block_until_ready(logits)

    assert logits.shape == (B, S, VOCAB), logits.shape
    assert bool(jnp.all(jnp.isfinite(logits)))
    print("KERNEL_OK")
</pallas_src>

<mosaic_0001>
module attributes {stable_mosaic.version = 11 : i64} {
  func.func @decoder_block_kernel(%arg0: i32, %arg1: memref<1x8x32xf32, #tpu.memory_space<vmem>>, %arg2: memref<4x32x8xbf16, #tpu.memory_space<vmem>>, %arg3: memref<4x1x8xf32, #tpu.memory_space<vmem>>, %arg4: memref<4x32x8xbf16, #tpu.memory_space<vmem>>, %arg5: memref<4x1x8xf32, #tpu.memory_space<vmem>>, %arg6: memref<4x32x8xbf16, #tpu.memory_space<vmem>>, %arg7: memref<4x1x8xf32, #tpu.memory_space<vmem>>, %arg8: memref<4x8x32xbf16, #tpu.memory_space<vmem>>, %arg9: memref<1x32xf32, #tpu.memory_space<vmem>>, %arg10: memref<1x32xf32, #tpu.memory_space<vmem>>, %arg11: memref<1x32xf32, #tpu.memory_space<vmem>>, %arg12: memref<32x128xbf16, #tpu.memory_space<vmem>>, %arg13: memref<1x128xf32, #tpu.memory_space<vmem>>, %arg14: memref<128x32xbf16, #tpu.memory_space<vmem>>, %arg15: memref<1x32xf32, #tpu.memory_space<vmem>>, %arg16: memref<1x32xf32, #tpu.memory_space<vmem>>, %arg17: memref<1x32xf32, #tpu.memory_space<vmem>>, %arg18: memref<1x8x32xf32, #tpu.memory_space<vmem>>) attributes {dimension_semantics = [#tpu.dimension_semantics<parallel>], iteration_bounds = array<i64: 2>, scalar_prefetch = 0 : i64, scratch_operands = 0 : i64, tpu.core_type = #tpu.core_type<tc>, window_params = [{transform_indices = @transform_0, window_bounds = array<i64: 1, 8, 32>}, {pipeline_mode = #tpu.pipeline_mode<synchronous>, transform_indices = @transform_1, window_bounds = array<i64: 4, 32, 8>}, {pipeline_mode = #tpu.pipeline_mode<synchronous>, transform_indices = @transform_2, window_bounds = array<i64: 4, 1, 8>}, {pipeline_mode = #tpu.pipeline_mode<synchronous>, transform_indices = @transform_3, window_bounds = array<i64: 4, 32, 8>}, {pipeline_mode = #tpu.pipeline_mode<synchronous>, transform_indices = @transform_4, window_bounds = array<i64: 4, 1, 8>}, {pipeline_mode = #tpu.pipeline_mode<synchronous>, transform_indices = @transform_5, window_bounds = array<i64: 4, 32, 8>}, {pipeline_mode = #tpu.pipeline_mode<synchronous>, transform_indices = @transform_6, window_bounds = array<i64: 4, 1, 8>}, {pipeline_mode = #tpu.pipeline_mode<synchronous>, transform_indices = @transform_7, window_bounds = array<i64: 4, 8, 32>}, {pipeline_mode = #tpu.pipeline_mode<synchronous>, transform_indices = @transform_8, window_bounds = array<i64: 1, 32>}, {pipeline_mode = #tpu.pipeline_mode<synchronous>, transform_indices = @transform_9, window_bounds = array<i64: 1, 32>}, {pipeline_mode = #tpu.pipeline_mode<synchronous>, transform_indices = @transform_10, window_bounds = array<i64: 1, 32>}, {pipeline_mode = #tpu.pipeline_mode<synchronous>, transform_indices = @transform_11, window_bounds = array<i64: 32, 128>}, {pipeline_mode = #tpu.pipeline_mode<synchronous>, transform_indices = @transform_12, window_bounds = array<i64: 1, 128>}, {pipeline_mode = #tpu.pipeline_mode<synchronous>, transform_indices = @transform_13, window_bounds = array<i64: 128, 32>}, {pipeline_mode = #tpu.pipeline_mode<synchronous>, transform_indices = @transform_14, window_bounds = array<i64: 1, 32>}, {pipeline_mode = #tpu.pipeline_mode<synchronous>, transform_indices = @transform_15, window_bounds = array<i64: 1, 32>}, {pipeline_mode = #tpu.pipeline_mode<synchronous>, transform_indices = @transform_16, window_bounds = array<i64: 1, 32>}, {transform_indices = @transform_17, window_bounds = array<i64: 1, 8, 32>}]} {
    %c0 = arith.constant 0 : index
    %c0_0 = arith.constant 0 : index
    %c0_1 = arith.constant 0 : index
    %0 = vector.load %arg1[%c0, %c0_0, %c0_1] : memref<1x8x32xf32, #tpu.memory_space<vmem>>, vector<1x8x32xf32>
    %1 = vector.shape_cast %0 : vector<1x8x32xf32> to vector<8x32xf32>
    %2 = arith.truncf %1 : vector<8x32xf32> to vector<8x32xbf16>
    %3 = vector.shape_cast %2 : vector<8x32xbf16> to vector<1x8x32xbf16>
    %4 = vector.shape_cast %3 : vector<1x8x32xbf16> to vector<1x8x32xbf16>
    %5 = vector.broadcast %4 : vector<1x8x32xbf16> to vector<4x8x32xbf16>
    %c0_2 = arith.constant 0 : index
    %c0_3 = arith.constant 0 : index
    %c0_4 = arith.constant 0 : index
    %6 = vector.load %arg2[%c0_2, %c0_3, %c0_4] : memref<4x32x8xbf16, #tpu.memory_space<vmem>>, vector<4x32x8xbf16>
    "tpu.trace_start"() <{level = 10 : i32, message = "hsk,hkd->hsd"}> : () -> ()
    %cst = arith.constant dense<0.000000e+00> : vector<4x8x8xf32>
    %7 = tpu.matmul %5, %6, %cst {dimension_numbers = #tpu.dot_dimension_numbers<[2], [1], [1], [2], [0, 0, 0, 1, 1, 2], [0], [0]>} : vector<4x8x32xbf16>, vector<4x32x8xbf16>, vector<4x8x8xf32> -> vector<4x8x8xf32>
    "tpu.trace_stop"() : () -> ()
    %c0_5 = arith.constant 0 : index
    %c0_6 = arith.constant 0 : index
    %c0_7 = arith.constant 0 : index
    %8 = vector.load %arg3[%c0_5, %c0_6, %c0_7] : memref<4x1x8xf32, #tpu.memory_space<vmem>>, vector<4x1x8xf32>
    %9 = vector.broadcast %8 : vector<4x1x8xf32> to vector<4x8x8xf32>
    %10 = arith.addf %7, %9 : vector<4x8x8xf32>
    %c0_8 = arith.constant 0 : index
    %c0_9 = arith.constant 0 : index
    %c0_10 = arith.constant 0 : index
    %11 = vector.load %arg4[%c0_8, %c0_9, %c0_10] : memref<4x32x8xbf16, #tpu.memory_space<vmem>>, vector<4x32x8xbf16>
    "tpu.trace_start"() <{level = 10 : i32, message = "hsk,hkd->hsd"}> : () -> ()
    %cst_11 = arith.constant dense<0.000000e+00> : vector<4x8x8xf32>
    %12 = tpu.matmul %5, %11, %cst_11 {dimension_numbers = #tpu.dot_dimension_numbers<[2], [1], [1], [2], [0, 0, 0, 1, 1, 2], [0], [0]>} : vector<4x8x32xbf16>, vector<4x32x8xbf16>, vector<4x8x8xf32> -> vector<4x8x8xf32>
    "tpu.trace_stop"() : () -> ()
    %c0_12 = arith.constant 0 : index
    %c0_13 = arith.constant 0 : index
    %c0_14 = arith.constant 0 : index
    %13 = vector.load %arg5[%c0_12, %c0_13, %c0_14] : memref<4x1x8xf32, #tpu.memory_space<vmem>>, vector<4x1x8xf32>
    %14 = vector.broadcast %13 : vector<4x1x8xf32> to vector<4x8x8xf32>
    %15 = arith.addf %12, %14 : vector<4x8x8xf32>
    %c0_15 = arith.constant 0 : index
    %c0_16 = arith.constant 0 : index
    %c0_17 = arith.constant 0 : index
    %16 = vector.load %arg6[%c0_15, %c0_16, %c0_17] : memref<4x32x8xbf16, #tpu.memory_space<vmem>>, vector<4x32x8xbf16>
    "tpu.trace_start"() <{level = 10 : i32, message = "hsk,hkd->hsd"}> : () -> ()
    %cst_18 = arith.constant dense<0.000000e+00> : vector<4x8x8xf32>
    %17 = tpu.matmul %5, %16, %cst_18 {dimension_numbers = #tpu.dot_dimension_numbers<[2], [1], [1], [2], [0, 0, 0, 1, 1, 2], [0], [0]>} : vector<4x8x32xbf16>, vector<4x32x8xbf16>, vector<4x8x8xf32> -> vector<4x8x8xf32>
    "tpu.trace_stop"() : () -> ()
    %c0_19 = arith.constant 0 : index
    %c0_20 = arith.constant 0 : index
    %c0_21 = arith.constant 0 : index
    %18 = vector.load %arg7[%c0_19, %c0_20, %c0_21] : memref<4x1x8xf32, #tpu.memory_space<vmem>>, vector<4x1x8xf32>
    %19 = vector.broadcast %18 : vector<4x1x8xf32> to vector<4x8x8xf32>
    %20 = arith.addf %17, %19 : vector<4x8x8xf32>
    %21 = arith.truncf %10 : vector<4x8x8xf32> to vector<4x8x8xbf16>
    %22 = arith.truncf %15 : vector<4x8x8xf32> to vector<4x8x8xbf16>
    "tpu.trace_start"() <{level = 10 : i32, message = "hqd,hkd->hqk"}> : () -> ()
    %cst_22 = arith.constant dense<0.000000e+00> : vector<4x8x8xf32>
    %23 = tpu.matmul %21, %22, %cst_22 {dimension_numbers = #tpu.dot_dimension_numbers<[2], [2], [1], [1], [0, 0, 0, 1, 1, 1], [0], [0]>} : vector<4x8x8xbf16>, vector<4x8x8xbf16>, vector<4x8x8xf32> -> vector<4x8x8xf32>
    "tpu.trace_stop"() : () -> ()
    %cst_23 = arith.constant 0.353553385 : f32
    %24 = vector.broadcast %cst_23 : f32 to vector<4x8x8xf32>
    %25 = arith.mulf %23, %24 : vector<4x8x8xf32>
    %26 = tpu.iota {dimensions = array<i32: 1>} : vector<4x8x8xi32>
    %27 = tpu.iota {dimensions = array<i32: 2>} : vector<4x8x8xi32>
    %28 = arith.cmpi sle, %27, %26 : vector<4x8x8xi32>
    %cst_24 = arith.constant -1.000000e+30 : f32
    %29 = vector.broadcast %cst_24 : f32 to vector<4x8x8xf32>
    %30 = arith.select %28, %25, %29 : vector<4x8x8xi1>, vector<4x8x8xf32>
    %cst_25 = arith.constant dense<0xFF800000> : vector<4x8xf32>
    %31 = vector.multi_reduction <maximumf>, %30, %cst_25 [2] : vector<4x8x8xf32> to vector<4x8xf32>
    %32 = vector.shape_cast %31 : vector<4x8xf32> to vector<4x8x1xf32>
    %33 = vector.broadcast %32 : vector<4x8x1xf32> to vector<4x8x8xf32>
    %34 = arith.subf %30, %33 : vector<4x8x8xf32>
    %35 = math.exp %34 : vector<4x8x8xf32>
    %cst_26 = arith.constant dense<0.000000e+00> : vector<4x8xf32>
    %36 = vector.multi_reduction <add>, %35, %cst_26 [2] : vector<4x8x8xf32> to vector<4x8xf32>
    %37 = vector.shape_cast %36 : vector<4x8xf32> to vector<4x8x1xf32>
    %38 = tpu.reciprocal %37 {approx = true} : vector<4x8x1xf32> -> vector<4x8x1xf32>
    %39 = vector.broadcast %38 : vector<4x8x1xf32> to vector<4x8x8xf32>
    %40 = arith.mulf %35, %39 : vector<4x8x8xf32>
    %41 = arith.truncf %40 : vector<4x8x8xf32> to vector<4x8x8xbf16>
    %42 = arith.truncf %20 : vector<4x8x8xf32> to vector<4x8x8xbf16>
    "tpu.trace_start"() <{level = 10 : i32, message = "hqk,hkd->hqd"}> : () -> ()
    %cst_27 = arith.constant dense<0.000000e+00> : vector<4x8x8xf32>
    %43 = tpu.matmul %41, %42, %cst_27 {dimension_numbers = #tpu.dot_dimension_numbers<[2], [1], [1], [2], [0, 0, 0, 1, 1, 2], [0], [0]>} : vector<4x8x8xbf16>, vector<4x8x8xbf16>, vector<4x8x8xf32> -> vector<4x8x8xf32>
    "tpu.trace_stop"() : () -> ()
    %44 = arith.truncf %43 : vector<4x8x8xf32> to vector<4x8x8xbf16>
    %c0_28 = arith.constant 0 : index
    %c0_29 = arith.constant 0 : index
    %c0_30 = arith.constant 0 : index
    %45 = vector.load %arg8[%c0_28, %c0_29, %c0_30] : memref<4x8x32xbf16, #tpu.memory_space<vmem>>, vector<4x8x32xbf16>
    "tpu.trace_start"() <{level = 10 : i32, message = "hqd,hdj->hqj"}> : () -> ()
    %cst_31 = arith.constant dense<0.000000e+00> : vector<4x8x32xf32>
    %46 = tpu.matmul %44, %45, %cst_31 {dimension_numbers = #tpu.dot_dimension_numbers<[2], [1], [1], [2], [0, 0, 0, 1, 1, 2], [0], [0]>} : vector<4x8x8xbf16>, vector<4x8x32xbf16>, vector<4x8x32xf32> -> vector<4x8x32xf32>
    "tpu.trace_stop"() : () -> ()
    %cst_32 = arith.constant dense<0.000000e+00> : vector<8x32xf32>
    %47 = vector.multi_reduction <add>, %46, %cst_32 [0] : vector<4x8x32xf32> to vector<8x32xf32>
    %c0_33 = arith.constant 0 : index
    %c0_34 = arith.constant 0 : index
    %48 = vector.load %arg9[%c0_33, %c0_34] : memref<1x32xf32, #tpu.memory_space<vmem>>, vector<1x32xf32>
    %49 = vector.broadcast %48 : vector<1x32xf32> to vector<8x32xf32>
    %50 = arith.addf %47, %49 : vector<8x32xf32>
    %51 = arith.addf %1, %50 : vector<8x32xf32>
    %cst_35 = arith.constant dense<0.000000e+00> : vector<8xf32>
    %52 = vector.multi_reduction <add>, %51, %cst_35 [1] : vector<8x32xf32> to vector<8xf32>
    %53 = vector.shape_cast %52 : vector<8xf32> to vector<8x1xf32>
    %cst_36 = arith.constant 3.200000e+01 : f32
    %54 = vector.broadcast %cst_36 : f32 to vector<8x1xf32>
    %55 = arith.divf %53, %54 : vector<8x1xf32>
    %56 = vector.broadcast %55 : vector<8x1xf32> to vector<8x32xf32>
    %57 = arith.subf %51, %56 : vector<8x32xf32>
    %58 = arith.mulf %57, %57 : vector<8x32xf32>
    %cst_37 = arith.constant dense<0.000000e+00> : vector<8xf32>
    %59 = vector.multi_reduction <add>, %58, %cst_37 [1] : vector<8x32xf32> to vector<8xf32>
    %60 = vector.shape_cast %59 : vector<8xf32> to vector<8x1xf32>
    %cst_38 = arith.constant 3.200000e+01 : f32
    %61 = vector.broadcast %cst_38 : f32 to vector<8x1xf32>
    %62 = arith.divf %60, %61 : vector<8x1xf32>
    %63 = vector.broadcast %55 : vector<8x1xf32> to vector<8x32xf32>
    %64 = arith.subf %51, %63 : vector<8x32xf32>
    %cst_39 = arith.constant 9.99999974E-6 : f32
    %65 = vector.broadcast %cst_39 : f32 to vector<8x1xf32>
    %66 = arith.addf %62, %65 : vector<8x1xf32>
    %67 = math.rsqrt %66 : vector<8x1xf32>
    %68 = vector.broadcast %67 : vector<8x1xf32> to vector<8x32xf32>
    %69 = arith.mulf %64, %68 : vector<8x32xf32>
    %c0_40 = arith.constant 0 : index
    %c0_41 = arith.constant 0 : index
    %70 = vector.load %arg10[%c0_40, %c0_41] : memref<1x32xf32, #tpu.memory_space<vmem>>, vector<1x32xf32>
    %71 = vector.broadcast %70 : vector<1x32xf32> to vector<8x32xf32>
    %72 = arith.mulf %69, %71 : vector<8x32xf32>
    %c0_42 = arith.constant 0 : index
    %c0_43 = arith.constant 0 : index
    %73 = vector.load %arg11[%c0_42, %c0_43] : memref<1x32xf32, #tpu.memory_space<vmem>>, vector<1x32xf32>
    %74 = vector.broadcast %73 : vector<1x32xf32> to vector<8x32xf32>
    %75 = arith.addf %72, %74 : vector<8x32xf32>
    %76 = arith.truncf %75 : vector<8x32xf32> to vector<8x32xbf16>
    %c0_44 = arith.constant 0 : index
    %c0_45 = arith.constant 0 : index
    %77 = vector.load %arg12[%c0_44, %c0_45] : memref<32x128xbf16, #tpu.memory_space<vmem>>, vector<32x128xbf16>
    %cst_46 = arith.constant dense<0.000000e+00> : vector<8x128xf32>
    %78 = tpu.matmul %76, %77, %cst_46 {dimension_numbers = #tpu.dot_dimension_numbers<[1], [0], [0], [1], [0, 0, 1, 1], [], []>} : vector<8x32xbf16>, vector<32x128xbf16>, vector<8x128xf32> -> vector<8x128xf32>
    %c0_47 = arith.constant 0 : index
    %c0_48 = arith.constant 0 : index
    %79 = vector.load %arg13[%c0_47, %c0_48] : memref<1x128xf32, #tpu.memory_space<vmem>>, vector<1x128xf32>
    %80 = vector.broadcast %79 : vector<1x128xf32> to vector<8x128xf32>
    %81 = arith.addf %78, %80 : vector<8x128xf32>
    %cst_49 = arith.constant 5.000000e-01 : f32
    %82 = vector.broadcast %cst_49 : f32 to vector<8x128xf32>
    %83 = arith.mulf %82, %81 : vector<8x128xf32>
    %cst_50 = arith.constant 0.707106769 : f32
    %84 = vector.broadcast %cst_50 : f32 to vector<8x128xf32>
    %85 = arith.mulf %81, %84 : vector<8x128xf32>
    %86 = math.erf %85 : vector<8x128xf32>
    %cst_51 = arith.constant 1.000000e+00 : f32
    %87 = vector.broadcast %cst_51 : f32 to vector<8x128xf32>
    %88 = arith.addf %87, %86 : vector<8x128xf32>
    %89 = arith.mulf %83, %88 : vector<8x128xf32>
    %90 = arith.truncf %89 : vector<8x128xf32> to vector<8x128xbf16>
    %c0_52 = arith.constant 0 : index
    %c0_53 = arith.constant 0 : index
    %91 = vector.load %arg14[%c0_52, %c0_53] : memref<128x32xbf16, #tpu.memory_space<vmem>>, vector<128x32xbf16>
    %cst_54 = arith.constant dense<0.000000e+00> : vector<8x32xf32>
    %92 = tpu.matmul %90, %91, %cst_54 {dimension_numbers = #tpu.dot_dimension_numbers<[1], [0], [0], [1], [0, 0, 1, 1], [], []>} : vector<8x128xbf16>, vector<128x32xbf16>, vector<8x32xf32> -> vector<8x32xf32>
    %c0_55 = arith.constant 0 : index
    %c0_56 = arith.constant 0 : index
    %93 = vector.load %arg15[%c0_55, %c0_56] : memref<1x32xf32, #tpu.memory_space<vmem>>, vector<1x32xf32>
    %94 = vector.broadcast %93 : vector<1x32xf32> to vector<8x32xf32>
    %95 = arith.addf %92, %94 : vector<8x32xf32>
    %96 = arith.addf %75, %95 : vector<8x32xf32>
    %cst_57 = arith.constant dense<0.000000e+00> : vector<8xf32>
    %97 = vector.multi_reduction <add>, %96, %cst_57 [1] : vector<8x32xf32> to vector<8xf32>
    %98 = vector.shape_cast %97 : vector<8xf32> to vector<8x1xf32>
    %cst_58 = arith.constant 3.200000e+01 : f32
    %99 = vector.broadcast %cst_58 : f32 to vector<8x1xf32>
    %100 = arith.divf %98, %99 : vector<8x1xf32>
    %101 = vector.broadcast %100 : vector<8x1xf32> to vector<8x32xf32>
    %102 = arith.subf %96, %101 : vector<8x32xf32>
    %103 = arith.mulf %102, %102 : vector<8x32xf32>
    %cst_59 = arith.constant dense<0.000000e+00> : vector<8xf32>
    %104 = vector.multi_reduction <add>, %103, %cst_59 [1] : vector<8x32xf32> to vector<8xf32>
    %105 = vector.shape_cast %104 : vector<8xf32> to vector<8x1xf32>
    %cst_60 = arith.constant 3.200000e+01 : f32
    %106 = vector.broadcast %cst_60 : f32 to vector<8x1xf32>
    %107 = arith.divf %105, %106 : vector<8x1xf32>
    %108 = vector.broadcast %100 : vector<8x1xf32> to vector<8x32xf32>
    %109 = arith.subf %96, %108 : vector<8x32xf32>
    %cst_61 = arith.constant 9.99999974E-6 : f32
    %110 = vector.broadcast %cst_61 : f32 to vector<8x1xf32>
    %111 = arith.addf %107, %110 : vector<8x1xf32>
    %112 = math.rsqrt %111 : vector<8x1xf32>
    %113 = vector.broadcast %112 : vector<8x1xf32> to vector<8x32xf32>
    %114 = arith.mulf %109, %113 : vector<8x32xf32>
    %c0_62 = arith.constant 0 : index
    %c0_63 = arith.constant 0 : index
    %115 = vector.load %arg16[%c0_62, %c0_63] : memref<1x32xf32, #tpu.memory_space<vmem>>, vector<1x32xf32>
    %116 = vector.broadcast %115 : vector<1x32xf32> to vector<8x32xf32>
    %117 = arith.mulf %114, %116 : vector<8x32xf32>
    %c0_64 = arith.constant 0 : index
    %c0_65 = arith.constant 0 : index
    %118 = vector.load %arg17[%c0_64, %c0_65] : memref<1x32xf32, #tpu.memory_space<vmem>>, vector<1x32xf32>
    %119 = vector.broadcast %118 : vector<1x32xf32> to vector<8x32xf32>
    %120 = arith.addf %117, %119 : vector<8x32xf32>
    %c0_66 = arith.constant 0 : index
    %c0_67 = arith.constant 0 : index
    %c0_68 = arith.constant 0 : index
    %121 = vector.load %arg18[%c0_66, %c0_67, %c0_68] : memref<1x8x32xf32, #tpu.memory_space<vmem>>, vector<1x8x32xf32>
    %122 = vector.shape_cast %121 : vector<1x8x32xf32> to vector<8x32xf32>
    %123 = vector.shape_cast %120 : vector<8x32xf32> to vector<1x8x32xf32>
    tpu.vector_store %arg18[%c0_66, %c0_67, %c0_68], %123 {strides = array<i32>} : memref<1x8x32xf32, #tpu.memory_space<vmem>>, vector<1x8x32xf32>,
    return
  }
  func.func @transform_0(%arg0: i32) -> (i32, i32, i32) {
    %c0_i32 = arith.constant 0 : i32
    %c0_i32_0 = arith.constant 0 : i32
    %c0_i32_1 = arith.constant 0 : i32
    return %arg0, %c0_i32, %c0_i32_0 : i32, i32, i32
  }
  func.func @transform_1(%arg0: i32) -> (i32, i32, i32) {
    %c0_i32 = arith.constant 0 : i32
    %c0_i32_0 = arith.constant 0 : i32
    %c0_i32_1 = arith.constant 0 : i32
    %c0_i32_2 = arith.constant 0 : i32
    return %c0_i32, %c0_i32_0, %c0_i32_1 : i32, i32, i32
  }
  func.func @transform_2(%arg0: i32) -> (i32, i32, i32) {
    %c0_i32 = arith.constant 0 : i32
    %c0_i32_0 = arith.constant 0 : i32
    %c0_i32_1 = arith.constant 0 : i32
    %c0_i32_2 = arith.constant 0 : i32
    return %c0_i32, %c0_i32_0, %c0_i32_1 : i32, i32, i32
  }
  func.func @transform_3(%arg0: i32) -> (i32, i32, i32) {
    %c0_i32 = arith.constant 0 : i32
    %c0_i32_0 = arith.constant 0 : i32
    %c0_i32_1 = arith.constant 0 : i32
    %c0_i32_2 = arith.constant 0 : i32
    return %c0_i32, %c0_i32_0, %c0_i32_1 : i32, i32, i32
  }
  func.func @transform_4(%arg0: i32) -> (i32, i32, i32) {
    %c0_i32 = arith.constant 0 : i32
    %c0_i32_0 = arith.constant 0 : i32
    %c0_i32_1 = arith.constant 0 : i32
    %c0_i32_2 = arith.constant 0 : i32
    return %c0_i32, %c0_i32_0, %c0_i32_1 : i32, i32, i32
  }
  func.func @transform_5(%arg0: i32) -> (i32, i32, i32) {
    %c0_i32 = arith.constant 0 : i32
    %c0_i32_0 = arith.constant 0 : i32
    %c0_i32_1 = arith.constant 0 : i32
    %c0_i32_2 = arith.constant 0 : i32
    return %c0_i32, %c0_i32_0, %c0_i32_1 : i32, i32, i32
  }
  func.func @transform_6(%arg0: i32) -> (i32, i32, i32) {
    %c0_i32 = arith.constant 0 : i32
    %c0_i32_0 = arith.constant 0 : i32
    %c0_i32_1 = arith.constant 0 : i32
    %c0_i32_2 = arith.constant 0 : i32
    return %c0_i32, %c0_i32_0, %c0_i32_1 : i32, i32, i32
  }
  func.func @transform_7(%arg0: i32) -> (i32, i32, i32) {
    %c0_i32 = arith.constant 0 : i32
    %c0_i32_0 = arith.constant 0 : i32
    %c0_i32_1 = arith.constant 0 : i32
    %c0_i32_2 = arith.constant 0 : i32
    return %c0_i32, %c0_i32_0, %c0_i32_1 : i32, i32, i32
  }
  func.func @transform_8(%arg0: i32) -> (i32, i32) {
    %c0_i32 = arith.constant 0 : i32
    %c0_i32_0 = arith.constant 0 : i32
    %c0_i32_1 = arith.constant 0 : i32
    return %c0_i32, %c0_i32_0 : i32, i32
  }
  func.func @transform_9(%arg0: i32) -> (i32, i32) {
    %c0_i32 = arith.constant 0 : i32
    %c0_i32_0 = arith.constant 0 : i32
    %c0_i32_1 = arith.constant 0 : i32
    return %c0_i32, %c0_i32_0 : i32, i32
  }
  func.func @transform_10(%arg0: i32) -> (i32, i32) {
    %c0_i32 = arith.constant 0 : i32
    %c0_i32_0 = arith.constant 0 : i32
    %c0_i32_1 = arith.constant 0 : i32
    return %c0_i32, %c0_i32_0 : i32, i32
  }
  func.func @transform_11(%arg0: i32) -> (i32, i32) {
    %c0_i32 = arith.constant 0 : i32
    %c0_i32_0 = arith.constant 0 : i32
    %c0_i32_1 = arith.constant 0 : i32
    return %c0_i32, %c0_i32_0 : i32, i32
  }
  func.func @transform_12(%arg0: i32) -> (i32, i32) {
    %c0_i32 = arith.constant 0 : i32
    %c0_i32_0 = arith.constant 0 : i32
    %c0_i32_1 = arith.constant 0 : i32
    return %c0_i32, %c0_i32_0 : i32, i32
  }
  func.func @transform_13(%arg0: i32) -> (i32, i32) {
    %c0_i32 = arith.constant 0 : i32
    %c0_i32_0 = arith.constant 0 : i32
    %c0_i32_1 = arith.constant 0 : i32
    return %c0_i32, %c0_i32_0 : i32, i32
  }
  func.func @transform_14(%arg0: i32) -> (i32, i32) {
    %c0_i32 = arith.constant 0 : i32
    %c0_i32_0 = arith.constant 0 : i32
    %c0_i32_1 = arith.constant 0 : i32
    return %c0_i32, %c0_i32_0 : i32, i32
  }
  func.func @transform_15(%arg0: i32) -> (i32, i32) {
    %c0_i32 = arith.constant 0 : i32
    %c0_i32_0 = arith.constant 0 : i32
    %c0_i32_1 = arith.constant 0 : i32
    return %c0_i32, %c0_i32_0 : i32, i32
  }
  func.func @transform_16(%arg0: i32) -> (i32, i32) {
    %c0_i32 = arith.constant 0 : i32
    %c0_i32_0 = arith.constant 0 : i32
    %c0_i32_1 = arith.constant 0 : i32
    return %c0_i32, %c0_i32_0 : i32, i32
  }
  func.func @transform_17(%arg0: i32) -> (i32, i32, i32) {
    %c0_i32 = arith.constant 0 : i32
    %c0_i32_0 = arith.constant 0 : i32
    %c0_i32_1 = arith.constant 0 : i32
    return %arg0, %c0_i32, %c0_i32_0 : i32, i32, i32
  }
}

</mosaic_0001>

<llo_original>
// kernel: tpu_custom_call.1
$region0: #{tpu_custom_call.1}
  #allocation0 [shape = 'u32[]', space=smem, size = 0x4, offset = 0x4, fixed_abs, tag = 'smem constant byte address 0x4 - core index']
  #allocation1 [shape = 'u32[72,128]{1,0:T(1,128)}', space=vmem, size = 0x9000, scoped, tag = 'internal scratch']
  %s0 = inlined_call_operand.vmem [shape: f32[2,8,32], index: 0, kind: input, shape index: {}]
  %s1 = inlined_call_operand.vmem [shape: bf16[4,32,8], index: 1, kind: input, shape index: {}]
  %s2 = inlined_call_operand.vmem [shape: f32[4,1,8], index: 2, kind: input, shape index: {}]
  %s3 = inlined_call_operand.vmem [shape: bf16[4,32,8], index: 3, kind: input, shape index: {}]
  %s4 = inlined_call_operand.vmem [shape: f32[4,1,8], index: 4, kind: input, shape index: {}]
  %s5 = inlined_call_operand.vmem [shape: bf16[4,32,8], index: 5, kind: input, shape index: {}]
  %s6 = inlined_call_operand.vmem [shape: f32[4,1,8], index: 6, kind: input, shape index: {}]
  %s7 = inlined_call_operand.vmem [shape: bf16[4,8,32], index: 7, kind: input, shape index: {}]
  %s8 = inlined_call_operand.vmem [shape: f32[1,32], index: 8, kind: input, shape index: {}]
  %s9 = inlined_call_operand.vmem [shape: f32[1,32], index: 9, kind: input, shape index: {}]
  %s10 = inlined_call_operand.vmem [shape: f32[1,32], index: 10, kind: input, shape index: {}]
  %s11 = inlined_call_operand.vmem [shape: bf16[32,128], index: 11, kind: input, shape index: {}]
  %s12 = inlined_call_operand.vmem [shape: f32[1,128], index: 12, kind: input, shape index: {}]
  %s13 = inlined_call_operand.vmem [shape: bf16[128,32], index: 13, kind: input, shape index: {}]
  %s14 = inlined_call_operand.vmem [shape: f32[1,32], index: 14, kind: input, shape index: {}]
  %s15 = inlined_call_operand.vmem [shape: f32[1,32], index: 15, kind: input, shape index: {}]
  %s16 = inlined_call_operand.vmem [shape: f32[1,32], index: 16, kind: input, shape index: {}]
  %s17 = inlined_call_operand.hbm [shape: f32[2,8,32], index: 17, kind: output, shape index: {}]
  %s18 = sld [smem:[#allocation0]]
  $region101: #{tpu_custom_call.1} parent=0
    _
  %s20 = ssub.s32 1, %s18
  %s21 = scalar_select 0, %s20, %s18
  $region1: #{tpu_custom_call.1} parent=0
    #allocation2 [shape = 'u8[8192]{0}', space=vmem, size = 0x2000, scoped, tag = 'output window, operand 0']
    #allocation3 [shape = 's32[2]{0}', space=sflag, size = 0x8, scoped, tag = 'scoped memory for tpu_custom_call.1']
    %22 = vsyncpa [#allocation3], 0
    %s23 = scalar_lea.sflag [#allocation3], 1
    %24 = vsyncpa %s23, 0
    loop: start=0, step=1, limit=4
    $region2: #{tpu_custom_call.1} parent=1 // loop_pre_header
      _
    $region3: #{tpu_custom_call.1} parent=1 // loop_header
      %s26 = sphi 0, %s30
      %p27 = scmp.ge.s32.totalorder %s26, 4
      %s36 = sphi 0, %s38
      %s39 = sphi 0, %s36
      %s40 = sphi 0, %s39
      %s56 = sphi 0, %s40
      %s60 = sphi 0, %s60
      %s62 = sphi 0, %s60
      %s63 = sphi 0, %s62
      %s77 = sphi 0, %s63
      %s81 = sphi 0, %s81
      %s83 = sphi 0, %s81
      %s84 = sphi 0, %s83
      %s98 = sphi 0, %s84
      %s102 = sphi 0, %s102
      %s104 = sphi 0, %s102
      %s105 = sphi 0, %s104
      %s119 = sphi 0, %s105
      %s123 = sphi 0, %s123
      %s125 = sphi 0, %s123
      %s126 = sphi 0, %s125
      %s140 = sphi 0, %s126
      %s144 = sphi 0, %s144
      %s146 = sphi 0, %s144
      %s147 = sphi 0, %s146
      %s161 = sphi 0, %s147
      %s165 = sphi 0, %s165
      %s167 = sphi 0, %s165
      %s168 = sphi 0, %s167
      %s182 = sphi 0, %s168
      %s186 = sphi 0, %s186
      %s188 = sphi 0, %s186
      %s189 = sphi 0, %s188
      %s203 = sphi 0, %s189
      %s207 = sphi 0, %s207
      %s209 = sphi 0, %s207
      %s210 = sphi 0, %s209
      %s224 = sphi 0, %s210
      %s228 = sphi 0, %s228
      %s230 = sphi 0, %s228
      %s231 = sphi 0, %s230
      %s245 = sphi 0, %s231
      %s249 = sphi 0, %s249
      %s251 = sphi 0, %s249
      %s252 = sphi 0, %s251
      %s266 = sphi 0, %s252
      %s270 = sphi 0, %s270
      %s272 = sphi 0, %s270
      %s273 = sphi 0, %s272
      %s287 = sphi 0, %s273
      %s291 = sphi 0, %s291
      %s293 = sphi 0, %s291
      %s294 = sphi 0, %s293
      %s308 = sphi 0, %s294
      %s312 = sphi 0, %s312
      %s314 = sphi 0, %s312
      %s315 = sphi 0, %s314
      %s329 = sphi 0, %s315
      %s333 = sphi 0, %s333
      %s335 = sphi 0, %s333
      %s336 = sphi 0, %s335
      %s350 = sphi 0, %s336
      %s354 = sphi 0, %s354
      %s356 = sphi 0, %s354
      %s357 = sphi 0, %s356
      %s371 = sphi 0, %s357
      %s375 = sphi 0, %s375
      %s377 = sphi 0, %s375
      %s378 = sphi 0, %s377
      %s392 = sphi 0, %s378
      %s398 = sphi 0, %s400
      %s401 = sphi 0, %s398
      %s402 = sphi 0, %s401
      %s418 = sphi 0, %s402
    $region4: #{tpu_custom_call.1} parent=1 // loop_header_branch
      %29 = sbr.rel (%p27) target = $region8
    $region5: #{tpu_custom_call.1} parent=1 // loop_body
      %s31 = ssub.s32 %s26, 1
      %s32 = ssub.s32 %s26, 2
      %s33 = sadd.s32 %s26, 1
      %s34 = ssub.s32 %s26, %s33
      %p35 = scmp.eq.s32.totalorder %s34, 0
      %s37 = sadd.s32 %s36, 1
      %s38 = scalar_select %p35, %s36, %s37
      %p41 = pneg %p35
      %p42 = scmp.eq.s32.totalorder %s26, 1
      %p43 = por %p41, %p42
      %p44 = scmp.ne.s32.totalorder %s36, %s39
      %p45 = scmp.eq.s32.totalorder %s26, 0
      %p46 = por %p44, %p45
      %p47 = scmp.ne.s32.totalorder %s36, %s39
      %p48 = scmp.eq.s32.totalorder %s31, 1
      %p49 = por %p47, %p48
      %p50 = scmp.ne.s32.totalorder %s39, %s40
      %p51 = scmp.eq.s32.totalorder %s31, 0
      %p52 = por %p50, %p51
      %p53 = scmp.ne.s32.totalorder %s39, %s40
      %p54 = scmp.eq.s32.totalorder %s32, 1
      %p55 = por %p53, %p54
      %p57 = scmp.ne.s32.totalorder %s40, %s56
      %p58 = scmp.eq.s32.totalorder %s32, 0
      %p59 = por %p57, %p58
      %s61 = sadd.s32 %s60, 1
      %p64 = scmp.eq.s32.totalorder %s26, 1
      %p65 = scmp.ne.s32.totalorder %s60, %s62
      %p66 = scmp.eq.s32.totalorder %s26, 0
      %p67 = por %p65, %p66
      %p68 = scmp.ne.s32.totalorder %s60, %s62
      %p69 = scmp.eq.s32.totalorder %s31, 1
      %p70 = por %p68, %p69
      %p71 = scmp.ne.s32.totalorder %s62, %s63
      %p72 = scmp.eq.s32.totalorder %s31, 0
      %p73 = por %p71, %p72
      %p74 = scmp.ne.s32.totalorder %s62, %s63
      %p75 = scmp.eq.s32.totalorder %s32, 1
      %p76 = por %p74, %p75
      %p78 = scmp.ne.s32.totalorder %s63, %s77
      %p79 = scmp.eq.s32.totalorder %s32, 0
      %p80 = por %p78, %p79
      %s82 = sadd.s32 %s81, 1
      %p85 = scmp.eq.s32.totalorder %s26, 1
      %p86 = scmp.ne.s32.totalorder %s81, %s83
      %p87 = scmp.eq.s32.totalorder %s26, 0
      %p88 = por %p86, %p87
      %p89 = scmp.ne.s32.totalorder %s81, %s83
      %p90 = scmp.eq.s32.totalorder %s31, 1
      %p91 = por %p89, %p90
      %p92 = scmp.ne.s32.totalorder %s83, %s84
      %p93 = scmp.eq.s32.totalorder %s31, 0
      %p94 = por %p92, %p93
      %p95 = scmp.ne.s32.totalorder %s83, %s84
      %p96 = scmp.eq.s32.totalorder %s32, 1
      %p97 = por %p95, %p96
      %p99 = scmp.ne.s32.totalorder %s84, %s98
      %p100 = scmp.eq.s32.totalorder %s32, 0
      %p101 = por %p99, %p100
      %s103 = sadd.s32 %s102, 1
      %p106 = scmp.eq.s32.totalorder %s26, 1
      %p107 = scmp.ne.s32.totalorder %s102, %s104
      %p108 = scmp.eq.s32.totalorder %s26, 0
      %p109 = por %p107, %p108
      %p110 = scmp.ne.s32.totalorder %s102, %s104
      %p111 = scmp.eq.s32.totalorder %s31, 1
      %p112 = por %p110, %p111
      %p113 = scmp.ne.s32.totalorder %s104, %s105
      %p114 = scmp.eq.s32.totalorder %s31, 0
      %p115 = por %p113, %p114
      %p116 = scmp.ne.s32.totalorder %s104, %s105
      %p117 = scmp.eq.s32.totalorder %s32, 1
      %p118 = por %p116, %p117
      %p120 = scmp.ne.s32.totalorder %s105, %s119
      %p121 = scmp.eq.s32.totalorder %s32, 0
      %p122 = por %p120, %p121
      %s124 = sadd.s32 %s123, 1
      %p127 = scmp.eq.s32.totalorder %s26, 1
      %p128 = scmp.ne.s32.totalorder %s123, %s125
      %p129 = scmp.eq.s32.totalorder %s26, 0
      %p130 = por %p128, %p129
      %p131 = scmp.ne.s32.totalorder %s123, %s125
      %p132 = scmp.eq.s32.totalorder %s31, 1
      %p133 = por %p131, %p132
      %p134 = scmp.ne.s32.totalorder %s125, %s126
      %p135 = scmp.eq.s32.totalorder %s31, 0
      %p136 = por %p134, %p135
      %p137 = scmp.ne.s32.totalorder %s125, %s126
      %p138 = scmp.eq.s32.totalorder %s32, 1
      %p139 = por %p137, %p138
      %p141 = scmp.ne.s32.totalorder %s126, %s140
      %p142 = scmp.eq.s32.totalorder %s32, 0
      %p143 = por %p141, %p142
      %s145 = sadd.s32 %s144, 1
      %p148 = scmp.eq.s32.totalorder %s26, 1
      %p149 = scmp.ne.s32.totalorder %s144, %s146
      %p150 = scmp.eq.s32.totalorder %s26, 0
      %p151 = por %p149, %p150
      %p152 = scmp.ne.s32.totalorder %s144, %s146
      %p153 = scmp.eq.s32.totalorder %s31, 1
      %p154 = por %p152, %p153
      %p155 = scmp.ne.s32.totalorder %s146, %s147
      %p156 = scmp.eq.s32.totalorder %s31, 0
      %p157 = por %p155, %p156
      %p158 = scmp.ne.s32.totalorder %s146, %s147
      %p159 = scmp.eq.s32.totalorder %s32, 1
      %p160 = por %p158, %p159
      %p162 = scmp.ne.s32.totalorder %s147, %s161
      %p163 = scmp.eq.s32.totalorder %s32, 0
      %p164 = por %p162, %p163
      %s166 = sadd.s32 %s165, 1
      %p169 = scmp.eq.s32.totalorder %s26, 1
      %p170 = scmp.ne.s32.totalorder %s165, %s167
      %p171 = scmp.eq.s32.totalorder %s26, 0
      %p172 = por %p170, %p171
      %p173 = scmp.ne.s32.totalorder %s165, %s167
      %p174 = scmp.eq.s32.totalorder %s31, 1
      %p175 = por %p173, %p174
      %p176 = scmp.ne.s32.totalorder %s167, %s168
      %p177 = scmp.eq.s32.totalorder %s31, 0
      %p178 = por %p176, %p177
      %p179 = scmp.ne.s32.totalorder %s167, %s168
      %p180 = scmp.eq.s32.totalorder %s32, 1
      %p181 = por %p179, %p180
      %p183 = scmp.ne.s32.totalorder %s168, %s182
      %p184 = scmp.eq.s32.totalorder %s32, 0
      %p185 = por %p183, %p184
      %s187 = sadd.s32 %s186, 1
      %p190 = scmp.eq.s32.totalorder %s26, 1
      %p191 = scmp.ne.s32.totalorder %s186, %s188
      %p192 = scmp.eq.s32.totalorder %s26, 0
      %p193 = por %p191, %p192
      %p194 = scmp.ne.s32.totalorder %s186, %s188
      %p195 = scmp.eq.s32.totalorder %s31, 1
      %p196 = por %p194, %p195
      %p197 = scmp.ne.s32.totalorder %s188, %s189
      %p198 = scmp.eq.s32.totalorder %s31, 0
      %p199 = por %p197, %p198
      %p200 = scmp.ne.s32.totalorder %s188, %s189
      %p201 = scmp.eq.s32.totalorder %s32, 1
      %p202 = por %p200, %p201
      %p204 = scmp.ne.s32.totalorder %s189, %s203
      %p205 = scmp.eq.s32.totalorder %s32, 0
      %p206 = por %p204, %p205
      %s208 = sadd.s32 %s207, 1
      %p211 = scmp.eq.s32.totalorder %s26, 1
      %p212 = scmp.ne.s32.totalorder %s207, %s209
      %p213 = scmp.eq.s32.totalorder %s26, 0
      %p214 = por %p212, %p213
      %p215 = scmp.ne.s32.totalorder %s207, %s209
      %p216 = scmp.eq.s32.totalorder %s31, 1
      %p217 = por %p215, %p216
      %p218 = scmp.ne.s32.totalorder %s209, %s210
      %p219 = scmp.eq.s32.totalorder %s31, 0
      %p220 = por %p218, %p219
      %p221 = scmp.ne.s32.totalorder %s209, %s210
      %p222 = scmp.eq.s32.totalorder %s32, 1
      %p223 = por %p221, %p222
      %p225 = scmp.ne.s32.totalorder %s210, %s224
      %p226 = scmp.eq.s32.totalorder %s32, 0
      %p227 = por %p225, %p226
      %s229 = sadd.s32 %s228, 1
      %p232 = scmp.eq.s32.totalorder %s26, 1
      %p233 = scmp.ne.s32.totalorder %s228, %s230
      %p234 = scmp.eq.s32.totalorder %s26, 0
      %p235 = por %p233, %p234
      %p236 = scmp.ne.s32.totalorder %s228, %s230
      %p237 = scmp.eq.s32.totalorder %s31, 1
      %p238 = por %p236, %p237
      %p239 = scmp.ne.s32.totalorder %s230, %s231
      %p240 = scmp.eq.s32.totalorder %s31, 0
      %p241 = por %p239, %p240
      %p242 = scmp.ne.s32.totalorder %s230, %s231
      %p243 = scmp.eq.s32.totalorder %s32, 1
      %p244 = por %p242, %p243
      %p246 = scmp.ne.s32.totalorder %s231, %s245
      %p247 = scmp.eq.s32.totalorder %s32, 0
      %p248 = por %p246, %p247
      %s250 = sadd.s32 %s249, 1
      %p253 = scmp.eq.s32.totalorder %s26, 1
      %p254 = scmp.ne.s32.totalorder %s249, %s251
      %p255 = scmp.eq.s32.totalorder %s26, 0
      %p256 = por %p254, %p255
      %p257 = scmp.ne.s32.totalorder %s249, %s251
      %p258 = scmp.eq.s32.totalorder %s31, 1
      %p259 = por %p257, %p258
      %p260 = scmp.ne.s32.totalorder %s251, %s252
      %p261 = scmp.eq.s32.totalorder %s31, 0
      %p262 = por %p260, %p261
      %p263 = scmp.ne.s32.totalorder %s251, %s252
      %p264 = scmp.eq.s32.totalorder %s32, 1
      %p265 = por %p263, %p264
      %p267 = scmp.ne.s32.totalorder %s252, %s266
      %p268 = scmp.eq.s32.totalorder %s32, 0
      %p269 = por %p267, %p268
      %s271 = sadd.s32 %s270, 1
      %p274 = scmp.eq.s32.totalorder %s26, 1
      %p275 = scmp.ne.s32.totalorder %s270, %s272
      %p276 = scmp.eq.s32.totalorder %s26, 0
      %p277 = por %p275, %p276
      %p278 = scmp.ne.s32.totalorder %s270, %s272
      %p279 = scmp.eq.s32.totalorder %s31, 1
      %p280 = por %p278, %p279
      %p281 = scmp.ne.s32.totalorder %s272, %s273
      %p282 = scmp.eq.s32.totalorder %s31, 0
      %p283 = por %p281, %p282
      %p284 = scmp.ne.s32.totalorder %s272, %s273
      %p285 = scmp.eq.s32.totalorder %s32, 1
      %p286 = por %p284, %p285
      %p288 = scmp.ne.s32.totalorder %s273, %s287
      %p289 = scmp.eq.s32.totalorder %s32, 0
      %p290 = por %p288, %p289
      %s292 = sadd.s32 %s291, 1
      %p295 = scmp.eq.s32.totalorder %s26, 1
      %p296 = scmp.ne.s32.totalorder %s291, %s293
      %p297 = scmp.eq.s32.totalorder %s26, 0
      %p298 = por %p296, %p297
      %p299 = scmp.ne.s32.totalorder %s291, %s293
      %p300 = scmp.eq.s32.totalorder %s31, 1
      %p301 = por %p299, %p300
      %p302 = scmp.ne.s32.totalorder %s293, %s294
      %p303 = scmp.eq.s32.totalorder %s31, 0
      %p304 = por %p302, %p303
      %p305 = scmp.ne.s32.totalorder %s293, %s294
      %p306 = scmp.eq.s32.totalorder %s32, 1
      %p307 = por %p305, %p306
      %p309 = scmp.ne.s32.totalorder %s294, %s308
      %p310 = scmp.eq.s32.totalorder %s32, 0
      %p311 = por %p309, %p310
      %s313 = sadd.s32 %s312, 1
      %p316 = scmp.eq.s32.totalorder %s26, 1
      %p317 = scmp.ne.s32.totalorder %s312, %s314
      %p318 = scmp.eq.s32.totalorder %s26, 0
      %p319 = por %p317, %p318
      %p320 = scmp.ne.s32.totalorder %s312, %s314
      %p321 = scmp.eq.s32.totalorder %s31, 1
      %p322 = por %p320, %p321
      %p323 = scmp.ne.s32.totalorder %s314, %s315
      %p324 = scmp.eq.s32.totalorder %s31, 0
      %p325 = por %p323, %p324
      %p326 = scmp.ne.s32.totalorder %s314, %s315
      %p327 = scmp.eq.s32.totalorder %s32, 1
      %p328 = por %p326, %p327
      %p330 = scmp.ne.s32.totalorder %s315, %s329
      %p331 = scmp.eq.s32.totalorder %s32, 0
      %p332 = por %p330, %p331
      %s334 = sadd.s32 %s333, 1
      %p337 = scmp.eq.s32.totalorder %s26, 1
      %p338 = scmp.ne.s32.totalorder %s333, %s335
      %p339 = scmp.eq.s32.totalorder %s26, 0
      %p340 = por %p338, %p339
      %p341 = scmp.ne.s32.totalorder %s333, %s335
      %p342 = scmp.eq.s32.totalorder %s31, 1
      %p343 = por %p341, %p342
      %p344 = scmp.ne.s32.totalorder %s335, %s336
      %p345 = scmp.eq.s32.totalorder %s31, 0
      %p346 = por %p344, %p345
      %p347 = scmp.ne.s32.totalorder %s335, %s336
      %p348 = scmp.eq.s32.totalorder %s32, 1
      %p349 = por %p347, %p348
      %p351 = scmp.ne.s32.totalorder %s336, %s350
      %p352 = scmp.eq.s32.totalorder %s32, 0
      %p353 = por %p351, %p352
      %s355 = sadd.s32 %s354, 1
      %p358 = scmp.eq.s32.totalorder %s26, 1
      %p359 = scmp.ne.s32.totalorder %s354, %s356
      %p360 = scmp.eq.s32.totalorder %s26, 0
      %p361 = por %p359, %p360
      %p362 = scmp.ne.s32.totalorder %s354, %s356
      %p363 = scmp.eq.s32.totalorder %s31, 1
      %p364 = por %p362, %p363
      %p365 = scmp.ne.s32.totalorder %s356, %s357
      %p366 = scmp.eq.s32.totalorder %s31, 0
      %p367 = por %p365, %p366
      %p368 = scmp.ne.s32.totalorder %s356, %s357
      %p369 = scmp.eq.s32.totalorder %s32, 1
      %p370 = por %p368, %p369
      %p372 = scmp.ne.s32.totalorder %s357, %s371
      %p373 = scmp.eq.s32.totalorder %s32, 0
      %p374 = por %p372, %p373
      %s376 = sadd.s32 %s375, 1
      %p379 = scmp.eq.s32.totalorder %s26, 1
      %p380 = scmp.ne.s32.totalorder %s375, %s377
      %p381 = scmp.eq.s32.totalorder %s26, 0
      %p382 = por %p380, %p381
      %p383 = scmp.ne.s32.totalorder %s375, %s377
      %p384 = scmp.eq.s32.totalorder %s31, 1
      %p385 = por %p383, %p384
      %p386 = scmp.ne.s32.totalorder %s377, %s378
      %p387 = scmp.eq.s32.totalorder %s31, 0
      %p388 = por %p386, %p387
      %p389 = scmp.ne.s32.totalorder %s377, %s378
      %p390 = scmp.eq.s32.totalorder %s32, 1
      %p391 = por %p389, %p390
      %p393 = scmp.ne.s32.totalorder %s378, %s392
      %p394 = scmp.eq.s32.totalorder %s32, 0
      %p395 = por %p393, %p394
      %s396 = ssub.s32 %s26, %s33
      %p397 = scmp.eq.s32.totalorder %s396, 0
      %s399 = sadd.s32 %s398, 1
      %s400 = scalar_select %p397, %s398, %s399
      %p403 = pneg %p397
      %p404 = scmp.eq.s32.totalorder %s26, 1
      %p405 = por %p403, %p404
      %p406 = scmp.ne.s32.totalorder %s398, %s401
      %p407 = scmp.eq.s32.totalorder %s26, 0
      %p408 = por %p406, %p407
      %p409 = scmp.ne.s32.totalorder %s398, %s401
      %p410 = scmp.eq.s32.totalorder %s31, 1
      %p411 = por %p409, %p410
      %p412 = scmp.ne.s32.totalorder %s401, %s402
      %p413 = scmp.eq.s32.totalorder %s31, 0
      %p414 = por %p412, %p413
      %p415 = scmp.ne.s32.totalorder %s401, %s402
      %p416 = scmp.eq.s32.totalorder %s32, 1
      %p417 = por %p415, %p416
      %p419 = scmp.ne.s32.totalorder %s402, %s418
      %p420 = scmp.eq.s32.totalorder %s32, 0
      %p421 = por %p419, %p420
      %p422 = scmp.le.s32.totalorder 1, %s26
      %p423 = scmp.lt.s32.totalorder %s26, 3
      %p424 = pnand %p422, %p423
      %p425 = pneg %p424
      // Predicated region
      $region9: #{tpu_custom_call.1} parent=5 // pred_check
        _
      $region10: #{tpu_custom_call.1} parent=5 // pred_check_branch
        %427 = sbr.rel (%p424) target = $region12
      $region11: #{tpu_custom_call.1} parent=5 // pred_region
        %s428 = ssub.s32 %s26, 1
        // Predicated region
        $region13: #{tpu_custom_call.1} parent=11 // pred_check
          %p429 = pneg %p73
        $region14: #{tpu_custom_call.1} parent=11 // pred_check_branch
          %431 = sbr.rel (%p429) target = $region16
        $region15: #{tpu_custom_call.1} parent=11 // pred_region
          _
        $region16: #{tpu_custom_call.1} parent=11 // pred_fallthru
          _
        // Predicated region
        $region17: #{tpu_custom_call.1} parent=11 // pred_check
          %p432 = pneg %p94
        $region18: #{tpu_custom_call.1} parent=11 // pred_check_branch
          %434 = sbr.rel (%p432) target = $region20
        $region19: #{tpu_custom_call.1} parent=11 // pred_region
          _
        $region20: #{tpu_custom_call.1} parent=11 // pred_fallthru
          _
        // Predicated region
        $region21: #{tpu_custom_call.1} parent=11 // pred_check
          %p435 = pneg %p115
        $region22: #{tpu_custom_call.1} parent=11 // pred_check_branch
          %437 = sbr.rel (%p435) target = $region24
        $region23: #{tpu_custom_call.1} parent=11 // pred_region
          _
        $region24: #{tpu_custom_call.1} parent=11 // pred_fallthru
          _
        // Predicated region
        $region25: #{tpu_custom_call.1} parent=11 // pred_check
          %p438 = pneg %p136
        $region26: #{tpu_custom_call.1} parent=11 // pred_check_branch
          %440 = sbr.rel (%p438) target = $region28
        $region27: #{tpu_custom_call.1} parent=11 // pred_region
          _
        $region28: #{tpu_custom_call.1} parent=11 // pred_fallthru
          _
        // Predicated region
        $region29: #{tpu_custom_call.1} parent=11 // pred_check
          %p441 = pneg %p157
        $region30: #{tpu_custom_call.1} parent=11 // pred_check_branch
          %443 = sbr.rel (%p441) target = $region32
        $region31: #{tpu_custom_call.1} parent=11 // pred_region
          _
        $region32: #{tpu_custom_call.1} parent=11 // pred_fallthru
          _
        // Predicated region
        $region33: #{tpu_custom_call.1} parent=11 // pred_check
          %p444 = pneg %p178
        $region34: #{tpu_custom_call.1} parent=11 // pred_check_branch
          %446 = sbr.rel (%p444) target = $region36
        $region35: #{tpu_custom_call.1} parent=11 // pred_region
          _
        $region36: #{tpu_custom_call.1} parent=11 // pred_fallthru
          _
        // Predicated region
        $region37: #{tpu_custom_call.1} parent=11 // pred_check
          %p447 = pneg %p199
        $region38: #{tpu_custom_call.1} parent=11 // pred_check_branch
          %449 = sbr.rel (%p447) target = $region40
        $region39: #{tpu_custom_call.1} parent=11 // pred_region
          _
        $region40: #{tpu_custom_call.1} parent=11 // pred_fallthru
          _
        // Predicated region
        $region41: #{tpu_custom_call.1} parent=11 // pred_check
          %p450 = pneg %p220
        $region42: #{tpu_custom_call.1} parent=11 // pred_check_branch
          %452 = sbr.rel (%p450) target = $region44
        $region43: #{tpu_custom_call.1} parent=11 // pred_region
          _
        $region44: #{tpu_custom_call.1} parent=11 // pred_fallthru
          _
        // Predicated region
        $region45: #{tpu_custom_call.1} parent=11 // pred_check
          %p453 = pneg %p241
        $region46: #{tpu_custom_call.1} parent=11 // pred_check_branch
          %455 = sbr.rel (%p453) target = $region48
        $region47: #{tpu_custom_call.1} parent=11 // pred_region
          _
        $region48: #{tpu_custom_call.1} parent=11 // pred_fallthru
          _
        // Predicated region
        $region49: #{tpu_custom_call.1} parent=11 // pred_check
          %p456 = pneg %p262
        $region50: #{tpu_custom_call.1} parent=11 // pred_check_branch
          %458 = sbr.rel (%p456) target = $region52
        $region51: #{tpu_custom_call.1} parent=11 // pred_region
          _
        $region52: #{tpu_custom_call.1} parent=11 // pred_fallthru
          _
        // Predicated region
        $region53: #{tpu_custom_call.1} parent=11 // pred_check
          %p459 = pneg %p283
        $region54: #{tpu_custom_call.1} parent=11 // pred_check_branch
          %461 = sbr.rel (%p459) target = $region56
        $region55: #{tpu_custom_call.1} parent=11 // pred_region
          _
        $region56: #{tpu_custom_call.1} parent=11 // pred_fallthru
          _
        // Predicated region
        $region57: #{tpu_custom_call.1} parent=11 // pred_check
          %p462 = pneg %p304
        $region58: #{tpu_custom_call.1} parent=11 // pred_check_branch
          %464 = sbr.rel (%p462) target = $region60
        $region59: #{tpu_custom_call.1} parent=11 // pred_region
          _
        $region60: #{tpu_custom_call.1} parent=11 // pred_fallthru
          _
        // Predicated region
        $region61: #{tpu_custom_call.1} parent=11 // pred_check
          %p465 = pneg %p325
        $region62: #{tpu_custom_call.1} parent=11 // pred_check_branch
          %467 = sbr.rel (%p465) target = $region64
        $region63: #{tpu_custom_call.1} parent=11 // pred_region
          _
        $region64: #{tpu_custom_call.1} parent=11 // pred_fallthru
          _
        // Predicated region
        $region65: #{tpu_custom_call.1} parent=11 // pred_check
          %p468 = pneg %p346
        $region66: #{tpu_custom_call.1} parent=11 // pred_check_branch
          %470 = sbr.rel (%p468) target = $region68
        $region67: #{tpu_custom_call.1} parent=11 // pred_region
          _
        $region68: #{tpu_custom_call.1} parent=11 // pred_fallthru
          _
        // Predicated region
        $region69: #{tpu_custom_call.1} parent=11 // pred_check
          %p471 = pneg %p367
        $region70: #{tpu_custom_call.1} parent=11 // pred_check_branch
          %473 = sbr.rel (%p471) target = $region72
        $region71: #{tpu_custom_call.1} parent=11 // pred_region
          _
        $region72: #{tpu_custom_call.1} parent=11 // pred_fallthru
          _
        // Predicated region
        $region73: #{tpu_custom_call.1} parent=11 // pred_check
          %p474 = pneg %p388
        $region74: #{tpu_custom_call.1} parent=11 // pred_check_branch
          %476 = sbr.rel (%p474) target = $region76
        $region75: #{tpu_custom_call.1} parent=11 // pred_region
          _
        $region76: #{tpu_custom_call.1} parent=11 // pred_fallthru
          _
      $region12: #{tpu_custom_call.1} parent=5 // pred_fallthru
        _
      %p477 = scmp.lt.s32.totalorder %s26, 2
      // Predicated region
      $region77: #{tpu_custom_call.1} parent=5 // pred_check
        %p478 = pneg %p477
      $region78: #{tpu_custom_call.1} parent=5 // pred_check_branch
        %480 = sbr.rel (%p478) target = $region80
      $region79: #{tpu_custom_call.1} parent=5 // pred_region
        // Predicated region
        $region81: #{tpu_custom_call.1} parent=79 // pred_check
          %p481 = pneg %p46
        $region82: #{tpu_custom_call.1} parent=79 // pred_check_branch
          %483 = sbr.rel (%p481) target = $region84
        $region83: #{tpu_custom_call.1} parent=79 // pred_region
          %p484 = scmp.lt.s32.totalorder %s26, 1
          %s485 = scalar_select %p484, %s26, 1
          %s486 = smul.addr %s485, 8
          %s487 = scalar_lea.vmem %s0, %s486
        $region84: #{tpu_custom_call.1} parent=79 // pred_fallthru
          _
      $region80: #{tpu_custom_call.1} parent=5 // pred_fallthru
        _
      %p488 = scmp.le.s32.totalorder 1, %s26
      %p489 = scmp.lt.s32.totalorder %s26, 3
      %p490 = pnand %p488, %p489
      %p491 = pneg %p490
      // Predicated region
      $region85: #{tpu_custom_call.1} parent=5 // pred_check
        _
      $region86: #{tpu_custom_call.1} parent=5 // pred_check_branch
        %493 = sbr.rel (%p490) target = $region88
      $region87: #{tpu_custom_call.1} parent=5 // pred_region
        %s494 = ssub.s32 %s26, 1
        %p495 = scmp.lt.s32.totalorder %s31, 1
        %s496 = scalar_select %p495, %s31, 1
        %s497 = smul.addr %s496, 8
        %s498 = scalar_lea.vmem %s0, %s497
        %p499 = pneg %p52
        %p500 = pneg %p49
        %p501 = pneg %p73
        %p502 = pneg %p70
        %p503 = pneg %p94
        %p504 = pneg %p91
        %p505 = pneg %p115
        %p506 = pneg %p112
        %p507 = pneg %p136
        %p508 = pneg %p133
        %p509 = pneg %p157
        %p510 = pneg %p154
        %p511 = pneg %p178
        %p512 = pneg %p175
        %p513 = pneg %p199
        %p514 = pneg %p196
        %p515 = pneg %p220
        %p516 = pneg %p217
        %p517 = pneg %p241
        %p518 = pneg %p238
        %p519 = pneg %p262
        %p520 = pneg %p259
        %p521 = pneg %p283
        %p522 = pneg %p280
        %p523 = pneg %p304
        %p524 = pneg %p301
        %p525 = pneg %p325
        %p526 = pneg %p322
        %p527 = pneg %p346
        %p528 = pneg %p343
        %p529 = pneg %p367
        %p530 = pneg %p364
        %p531 = pneg %p388
        %p532 = pneg %p385
        %p533 = pneg %p414
        %p534 = pneg %p411
        %s535 = sand.u32 %s401, 1
        %s536 = scalar_lea.sflag [#allocation3], %s535
        %s537 = sand.u32 %s401, 1
        %s538 = smul.addr %s537, 8
        %s539 = scalar_lea.vmem [#allocation2], %s538
        %p540 = scmp.lt.s32.totalorder %s31, 1
        %s541 = scalar_select %p540, %s31, 1
        %s542 = smul.addr %s541, 8
        %s543 = scalar_lea.vmem %s0, %s542
        %v545 = vld [vmem:[%s543] sm:$0xff]
        %v546 = vpack.c.bf16 %v545, %v545
        %v547 = vld [vmem:[%s1] sm:$0xf]
        %v548 = vld [vmem:[%s1 + $0x4] sm:$0xf]
        %v549 = vld [vmem:[%s1 + $0x8] sm:$0xf]
        %v550 = vld [vmem:[%s1 + $0xc] sm:$0xf]
        %v551 = vld [vmem:[%s1 + $0x10] sm:$0xf]
        %v552 = vld [vmem:[%s1 + $0x14] sm:$0xf]
        %v553 = vld [vmem:[%s1 + $0x18] sm:$0xf]
        %v554 = vld [vmem:[%s1 + $0x1c] sm:$0xf]
        %v555 = vld [vmem:[%s1 + $0x20] sm:$0xf]
        %v556 = vld [vmem:[%s1 + $0x24] sm:$0xf]
        %v557 = vld [vmem:[%s1 + $0x28] sm:$0xf]
        %v558 = vld [vmem:[%s1 + $0x2c] sm:$0xf]
        %v559 = vld [vmem:[%s1 + $0x30] sm:$0xf]
        %v560 = vld [vmem:[%s1 + $0x34] sm:$0xf]
        %v561 = vld [vmem:[%s1 + $0x38] sm:$0xf]
        %v562 = vld [vmem:[%s1 + $0x3c] sm:$0xf]
        %v563 = vld [vmem:[%s2] sm:$0x1]
        %v564 = vld [vmem:[%s2 + $0x1] sm:$0x1]
        %v565 = vld [vmem:[%s2 + $0x2] sm:$0x1]
        %v566 = vld [vmem:[%s2 + $0x3] sm:$0x1]
        %v571 = vperm.slane %v563, 0
        %v572 = vperm.slane %v564, 0
        %v573 = vperm.slane %v565, 0
        %v574 = vperm.slane %v566, 0
        %v583 = vunpack.c.l.b16 %v547
        %v584 = vunpack.c.l.b16 %v548
        %v585 = vunpack.c.l.b16 %v549
        %v586 = vunpack.c.l.b16 %v550
        %v587 = vpack.c.b16 %v584, %v583
        %v588 = vpack.c.b16 %v586, %v585
        %vm591 = vcmask 261120
        %v593 = vsel %vm591, %v546, 0
        %595 = vmatpush.bf16.msra.mxu0 0
        %596 = vmatpush.bf16.msra.mxu0 0
        %597 = vmatpush.bf16.msra.mxu0 0
        %598 = vmatpush.bf16.msra.mxu0 0
        %599 = vmatpush.bf16.msra.mxu0 0
        %600 = vmatpush.bf16.msra.mxu0 0
        %601 = vmatpush.bf16.msra.mxu0 %v588
        %602 = vmatpush.bf16.msra.mxu0 %v587
        %603 = vmatmul.bf16.gmra.mxu0 %v593
        %v604 = vpop.f32.mrf.mxu0
        %v605 = vadd.f32 %v571, %v604
        %v606 = vpop.f32.mrf.mxu0
        %607 = vdwg.mxu0
        %v612 = vunpack.c.l.b16 %v551
        %v613 = vunpack.c.l.b16 %v552
        %v614 = vunpack.c.l.b16 %v553
        %v615 = vunpack.c.l.b16 %v554
        %v616 = vpack.c.b16 %v613, %v612
        %v617 = vpack.c.b16 %v615, %v614
        %620 = vmatpush.bf16.msra.mxu0 0
        %621 = vmatpush.bf16.msra.mxu0 0
        %622 = vmatpush.bf16.msra.mxu0 0
        %623 = vmatpush.bf16.msra.mxu0 0
        %624 = vmatpush.bf16.msra.mxu0 0
        %625 = vmatpush.bf16.msra.mxu0 0
        %626 = vmatpush.bf16.msra.mxu0 %v617
        %627 = vmatpush.bf16.msra.mxu0 %v616
        %628 = vmatmul.bf16.gmra.mxu0 %v593
        %v629 = vpop.f32.mrf.mxu0
        %v630 = vadd.f32 %v572, %v629
        %v631 = vpop.f32.mrf.mxu0
        %632 = vdwg.mxu0
        %v637 = vunpack.c.l.b16 %v555
        %v638 = vunpack.c.l.b16 %v556
        %v639 = vunpack.c.l.b16 %v557
        %v640 = vunpack.c.l.b16 %v558
        %v641 = vpack.c.b16 %v638, %v637
        %v642 = vpack.c.b16 %v640, %v639
        %645 = vmatpush.bf16.msra.mxu0 0
        %646 = vmatpush.bf16.msra.mxu0 0
        %647 = vmatpush.bf16.msra.mxu0 0
        %648 = vmatpush.bf16.msra.mxu0 0
        %649 = vmatpush.bf16.msra.mxu0 0
        %650 = vmatpush.bf16.msra.mxu0 0
        %651 = vmatpush.bf16.msra.mxu0 %v642
        %652 = vmatpush.bf16.msra.mxu0 %v641
        %653 = vmatmul.bf16.gmra.mxu0 %v593
        %v654 = vpop.f32.mrf.mxu0
        %v655 = vadd.f32 %v573, %v654
        %v656 = vpop.f32.mrf.mxu0
        %657 = vdwg.mxu0
        %v662 = vunpack.c.l.b16 %v559
        %v663 = vunpack.c.l.b16 %v560
        %v664 = vunpack.c.l.b16 %v561
        %v665 = vunpack.c.l.b16 %v562
        %v666 = vpack.c.b16 %v663, %v662
        %v667 = vpack.c.b16 %v665, %v664
        %670 = vmatpush.bf16.msra.mxu0 0
        %671 = vmatpush.bf16.msra.mxu0 0
        %672 = vmatpush.bf16.msra.mxu0 0
        %673 = vmatpush.bf16.msra.mxu0 0
        %674 = vmatpush.bf16.msra.mxu0 0
        %675 = vmatpush.bf16.msra.mxu0 0
        %676 = vmatpush.bf16.msra.mxu0 %v667
        %677 = vmatpush.bf16.msra.mxu0 %v666
        %678 = vmatmul.bf16.gmra.mxu0 %v593
        %v679 = vpop.f32.mrf.mxu0
        %v680 = vadd.f32 %v574, %v679
        %v681 = vpop.f32.mrf.mxu0
        %682 = vdwg.mxu0
        %v683 = vld [vmem:[%s3] sm:$0xf]
        %v684 = vld [vmem:[%s3 + $0x4] sm:$0xf]
        %v685 = vld [vmem:[%s3 + $0x8] sm:$0xf]
        %v686 = vld [vmem:[%s3 + $0xc] sm:$0xf]
        %v687 = vld [vmem:[%s3 + $0x10] sm:$0xf]
        %v688 = vld [vmem:[%s3 + $0x14] sm:$0xf]
        %v689 = vld [vmem:[%s3 + $0x18] sm:$0xf]
        %v690 = vld [vmem:[%s3 + $0x1c] sm:$0xf]
        %v691 = vld [vmem:[%s3 + $0x20] sm:$0xf]
        %v692 = vld [vmem:[%s3 + $0x24] sm:$0xf]
        %v693 = vld [vmem:[%s3 + $0x28] sm:$0xf]
        %v694 = vld [vmem:[%s3 + $0x2c] sm:$0xf]
        %v695 = vld [vmem:[%s3 + $0x30] sm:$0xf]
        %v696 = vld [vmem:[%s3 + $0x34] sm:$0xf]
        %v697 = vld [vmem:[%s3 + $0x38] sm:$0xf]
        %v698 = vld [vmem:[%s3 + $0x3c] sm:$0xf]
        %v699 = vld [vmem:[%s4] sm:$0x1]
        %v700 = vld [vmem:[%s4 + $0x1] sm:$0x1]
        %v701 = vld [vmem:[%s4 + $0x2] sm:$0x1]
        %v702 = vld [vmem:[%s4 + $0x3] sm:$0x1]
        %v707 = vperm.slane %v699, 0
        %v708 = vperm.slane %v700, 0
        %v709 = vperm.slane %v701, 0
        %v710 = vperm.slane %v702, 0
        %v719 = vunpack.c.l.b16 %v683
        %v720 = vunpack.c.l.b16 %v684
        %v721 = vunpack.c.l.b16 %v685
        %v722 = vunpack.c.l.b16 %v686
        %v723 = vpack.c.b16 %v720, %v719
        %v724 = vpack.c.b16 %v722, %v721
        %727 = vmatpush.bf16.msra.mxu0 0
        %728 = vmatpush.bf16.msra.mxu0 0
        %729 = vmatpush.bf16.msra.mxu0 0
        %730 = vmatpush.bf16.msra.mxu0 0
        %731 = vmatpush.bf16.msra.mxu0 0
        %732 = vmatpush.bf16.msra.mxu0 0
        %733 = vmatpush.bf16.msra.mxu0 %v724
        %734 = vmatpush.bf16.msra.mxu0 %v723
        %735 = vmatmul.bf16.gmra.mxu0 %v593
        %v736 = vpop.f32.mrf.mxu0
        %v737 = vadd.f32 %v707, %v736
        %v738 = vpop.f32.mrf.mxu0
        %739 = vdwg.mxu0
        %v744 = vunpack.c.l.b16 %v687
        %v745 = vunpack.c.l.b16 %v688
        %v746 = vunpack.c.l.b16 %v689
        %v747 = vunpack.c.l.b16 %v690
        %v748 = vpack.c.b16 %v745, %v744
        %v749 = vpack.c.b16 %v747, %v746
        %752 = vmatpush.bf16.msra.mxu0 0
        %753 = vmatpush.bf16.msra.mxu0 0
        %754 = vmatpush.bf16.msra.mxu0 0
        %755 = vmatpush.bf16.msra.mxu0 0
        %756 = vmatpush.bf16.msra.mxu0 0
        %757 = vmatpush.bf16.msra.mxu0 0
        %758 = vmatpush.bf16.msra.mxu0 %v749
        %759 = vmatpush.bf16.msra.mxu0 %v748
        %760 = vmatmul.bf16.gmra.mxu0 %v593
        %v761 = vpop.f32.mrf.mxu0
        %v762 = vadd.f32 %v708, %v761
        %v763 = vpop.f32.mrf.mxu0
        %764 = vdwg.mxu0
        %v769 = vunpack.c.l.b16 %v691
        %v770 = vunpack.c.l.b16 %v692
        %v771 = vunpack.c.l.b16 %v693
        %v772 = vunpack.c.l.b16 %v694
        %v773 = vpack.c.b16 %v770, %v769
        %v774 = vpack.c.b16 %v772, %v771
        %777 = vmatpush.bf16.msra.mxu0 0
        %778 = vmatpush.bf16.msra.mxu0 0
        %779 = vmatpush.bf16.msra.mxu0 0
        %780 = vmatpush.bf16.msra.mxu0 0
        %781 = vmatpush.bf16.msra.mxu0 0
        %782 = vmatpush.bf16.msra.mxu0 0
        %783 = vmatpush.bf16.msra.mxu0 %v774
        %784 = vmatpush.bf16.msra.mxu0 %v773
        %785 = vmatmul.bf16.gmra.mxu0 %v593
        %v786 = vpop.f32.mrf.mxu0
        %v787 = vadd.f32 %v709, %v786
        %v788 = vpop.f32.mrf.mxu0
        %789 = vdwg.mxu0
        %v794 = vunpack.c.l.b16 %v695
        %v795 = vunpack.c.l.b16 %v696
        %v796 = vunpack.c.l.b16 %v697
        %v797 = vunpack.c.l.b16 %v698
        %v798 = vpack.c.b16 %v795, %v794
        %v799 = vpack.c.b16 %v797, %v796
        %802 = vmatpush.bf16.msra.mxu0 0
        %803 = vmatpush.bf16.msra.mxu0 0
        %804 = vmatpush.bf16.msra.mxu0 0
        %805 = vmatpush.bf16.msra.mxu0 0
        %806 = vmatpush.bf16.msra.mxu0 0
        %807 = vmatpush.bf16.msra.mxu0 0
        %808 = vmatpush.bf16.msra.mxu0 %v799
        %809 = vmatpush.bf16.msra.mxu0 %v798
        %810 = vmatmul.bf16.gmra.mxu0 %v593
        %v811 = vpop.f32.mrf.mxu0
        %v812 = vadd.f32 %v710, %v811
        %v813 = vpop.f32.mrf.mxu0
        %814 = vdwg.mxu0
        %v815 = vld [vmem:[%s5] sm:$0xf]
        %v816 = vld [vmem:[%s5 + $0x4] sm:$0xf]
        %v817 = vld [vmem:[%s5 + $0x8] sm:$0xf]
        %v818 = vld [vmem:[%s5 + $0xc] sm:$0xf]
        %v819 = vld [vmem:[%s5 + $0x10] sm:$0xf]
        %v820 = vld [vmem:[%s5 + $0x14] sm:$0xf]
        %v821 = vld [vmem:[%s5 + $0x18] sm:$0xf]
        %v822 = vld [vmem:[%s5 + $0x1c] sm:$0xf]
        %v823 = vld [vmem:[%s5 + $0x20] sm:$0xf]
        %v824 = vld [vmem:[%s5 + $0x24] sm:$0xf]
        %v825 = vld [vmem:[%s5 + $0x28] sm:$0xf]
        %v826 = vld [vmem:[%s5 + $0x2c] sm:$0xf]
        %v827 = vld [vmem:[%s5 + $0x30] sm:$0xf]
        %v828 = vld [vmem:[%s5 + $0x34] sm:$0xf]
        %v829 = vld [vmem:[%s5 + $0x38] sm:$0xf]
        %v830 = vld [vmem:[%s5 + $0x3c] sm:$0xf]
        %v831 = vld [vmem:[%s6] sm:$0x1]
        %v832 = vld [vmem:[%s6 + $0x1] sm:$0x1]
        %v833 = vld [vmem:[%s6 + $0x2] sm:$0x1]
        %v834 = vld [vmem:[%s6 + $0x3] sm:$0x1]
        %v839 = vperm.slane %v831, 0
        %v840 = vperm.slane %v832, 0
        %v841 = vperm.slane %v833, 0
        %v842 = vperm.slane %v834, 0
        %v851 = vunpack.c.l.b16 %v815
        %v852 = vunpack.c.l.b16 %v816
        %v853 = vunpack.c.l.b16 %v817
        %v854 = vunpack.c.l.b16 %v818
        %v855 = vpack.c.b16 %v852, %v851
        %v856 = vpack.c.b16 %v854, %v853
        %859 = vmatpush.bf16.msra.mxu0 0
        %860 = vmatpush.bf16.msra.mxu0 0
        %861 = vmatpush.bf16.msra.mxu0 0
        %862 = vmatpush.bf16.msra.mxu0 0
        %863 = vmatpush.bf16.msra.mxu0 0
        %864 = vmatpush.bf16.msra.mxu0 0
        %865 = vmatpush.bf16.msra.mxu0 %v856
        %866 = vmatpush.bf16.msra.mxu0 %v855
        %867 = vmatmul.bf16.gmra.mxu0 %v593
        %v868 = vpop.f32.mrf.mxu0
        %v869 = vadd.f32 %v839, %v868
        %v870 = vpop.f32.mrf.mxu0
        %871 = vdwg.mxu0
        %v876 = vunpack.c.l.b16 %v819
        %v877 = vunpack.c.l.b16 %v820
        %v878 = vunpack.c.l.b16 %v821
        %v879 = vunpack.c.l.b16 %v822
        %v880 = vpack.c.b16 %v877, %v876
        %v881 = vpack.c.b16 %v879, %v878
        %884 = vmatpush.bf16.msra.mxu0 0
        %885 = vmatpush.bf16.msra.mxu0 0
        %886 = vmatpush.bf16.msra.mxu0 0
        %887 = vmatpush.bf16.msra.mxu0 0
        %888 = vmatpush.bf16.msra.mxu0 0
        %889 = vmatpush.bf16.msra.mxu0 0
        %890 = vmatpush.bf16.msra.mxu0 %v881
        %891 = vmatpush.bf16.msra.mxu0 %v880
        %892 = vmatmul.bf16.gmra.mxu0 %v593
        %v893 = vpop.f32.mrf.mxu0
        %v894 = vadd.f32 %v840, %v893
        %v895 = vpop.f32.mrf.mxu0
        %896 = vdwg.mxu0
        %v901 = vunpack.c.l.b16 %v823
        %v902 = vunpack.c.l.b16 %v824
        %v903 = vunpack.c.l.b16 %v825
        %v904 = vunpack.c.l.b16 %v826
        %v905 = vpack.c.b16 %v902, %v901
        %v906 = vpack.c.b16 %v904, %v903
        %909 = vmatpush.bf16.msra.mxu0 0
        %910 = vmatpush.bf16.msra.mxu0 0
        %911 = vmatpush.bf16.msra.mxu0 0
        %912 = vmatpush.bf16.msra.mxu0 0
        %913 = vmatpush.bf16.msra.mxu0 0
        %914 = vmatpush.bf16.msra.mxu0 0
        %915 = vmatpush.bf16.msra.mxu0 %v906
        %916 = vmatpush.bf16.msra.mxu0 %v905
        %917 = vmatmul.bf16.gmra.mxu0 %v593
        %v918 = vpop.f32.mrf.mxu0
        %v919 = vadd.f32 %v841, %v918
        %v920 = vpop.f32.mrf.mxu0
        %921 = vdwg.mxu0
        %v926 = vunpack.c.l.b16 %v827
        %v927 = vunpack.c.l.b16 %v828
        %v928 = vunpack.c.l.b16 %v829
        %v929 = vunpack.c.l.b16 %v830
        %v930 = vpack.c.b16 %v927, %v926
        %v931 = vpack.c.b16 %v929, %v928
        %934 = vmatpush.bf16.msra.mxu0 0
        %935 = vmatpush.bf16.msra.mxu0 0
        %936 = vmatpush.bf16.msra.mxu0 0
        %937 = vmatpush.bf16.msra.mxu0 0
        %938 = vmatpush.bf16.msra.mxu0 0
        %939 = vmatpush.bf16.msra.mxu0 0
        %940 = vmatpush.bf16.msra.mxu0 %v931
        %941 = vmatpush.bf16.msra.mxu0 %v930
        %942 = vmatmul.bf16.gmra.mxu0 %v593
        %v943 = vpop.f32.mrf.mxu0
        %v944 = vadd.f32 %v842, %v943
        %v945 = vpop.f32.mrf.mxu0
        %946 = vdwg.mxu0
        %v947 = vpack.c.bf16 %v605, %v605
        %v948 = vpack.c.bf16 %v630, %v630
        %v949 = vpack.c.bf16 %v655, %v655
        %v950 = vpack.c.bf16 %v680, %v680
        %v951 = vpack.c.bf16 %v737, %v737
        %v952 = vpack.c.bf16 %v762, %v762
        %v953 = vpack.c.bf16 %v787, %v787
        %v954 = vpack.c.bf16 %v812, %v812
        %vm955 = vcmask 64512
        %v957 = vsel %vm955, %v947, 0
        %v960 = vsel %vm955, %v951, 0
        %962 = vmatpush.bf16.xpose.msra.mxu0 0
        %963 = vmatpush.bf16.xpose.msra.mxu0 0
        %964 = vmatpush.bf16.xpose.msra.mxu0 0
        %965 = vmatpush.bf16.xpose.msra.mxu0 0
        %966 = vmatpush.bf16.xpose.msra.mxu0 0
        %967 = vmatpush.bf16.xpose.msra.mxu0 0
        %968 = vmatpush.bf16.xpose.msra.mxu0 0
        %969 = vmatpush.bf16.xpose.msra.mxu0 %v960
        %970 = vmatmul.bf16.gmra.mxu0 %v957
        %v971 = vpop.f32.mrf.mxu0
        %v972 = vadd.f32 0.0, %v971
        %v973 = vpop.f32.mrf.mxu0
        %974 = vdwg.mxu0
        %v976 = vsel %vm955, %v948, 0
        %v979 = vsel %vm955, %v952, 0
        %981 = vmatpush.bf16.xpose.msra.mxu0 0
        %982 = vmatpush.bf16.xpose.msra.mxu0 0
        %983 = vmatpush.bf16.xpose.msra.mxu0 0
        %984 = vmatpush.bf16.xpose.msra.mxu0 0
        %985 = vmatpush.bf16.xpose.msra.mxu0 0
        %986 = vmatpush.bf16.xpose.msra.mxu0 0
        %987 = vmatpush.bf16.xpose.msra.mxu0 0
        %988 = vmatpush.bf16.xpose.msra.mxu0 %v979
        %989 = vmatmul.bf16.gmra.mxu0 %v976
        %v990 = vpop.f32.mrf.mxu0
        %v991 = vadd.f32 0.0, %v990
        %v992 = vpop.f32.mrf.mxu0
        %993 = vdwg.mxu0
        %v995 = vsel %vm955, %v949, 0
        %v998 = vsel %vm955, %v953, 0
        %1000 = vmatpush.bf16.xpose.msra.mxu0 0
        %1001 = vmatpush.bf16.xpose.msra.mxu0 0
        %1002 = vmatpush.bf16.xpose.msra.mxu0 0
        %1003 = vmatpush.bf16.xpose.msra.mxu0 0
        %1004 = vmatpush.bf16.xpose.msra.mxu0 0
        %1005 = vmatpush.bf16.xpose.msra.mxu0 0
        %1006 = vmatpush.bf16.xpose.msra.mxu0 0
        %1007 = vmatpush.bf16.xpose.msra.mxu0 %v998
        %1008 = vmatmul.bf16.gmra.mxu0 %v995
        %v1009 = vpop.f32.mrf.mxu0
        %v1010 = vadd.f32 0.0, %v1009
        %v1011 = vpop.f32.mrf.mxu0
        %1012 = vdwg.mxu0
        %v1014 = vsel %vm955, %v950, 0
        %v1017 = vsel %vm955, %v954, 0
        %1019 = vmatpush.bf16.xpose.msra.mxu0 0
        %1020 = vmatpush.bf16.xpose.msra.mxu0 0
        %1021 = vmatpush.bf16.xpose.msra.mxu0 0
        %1022 = vmatpush.bf16.xpose.msra.mxu0 0
        %1023 = vmatpush.bf16.xpose.msra.mxu0 0
        %1024 = vmatpush.bf16.xpose.msra.mxu0 0
        %1025 = vmatpush.bf16.xpose.msra.mxu0 0
        %1026 = vmatpush.bf16.xpose.msra.mxu0 %v1017
        %1027 = vmatmul.bf16.gmra.mxu0 %v1014
        %v1028 = vpop.f32.mrf.mxu0
        %v1029 = vadd.f32 0.0, %v1028
        %v1030 = vpop.f32.mrf.mxu0
        %1031 = vdwg.mxu0
        %v1032 = vmul.f32 %v972, 0.35355338
        %v1033 = vmul.f32 %v991, 0.35355338
        %v1034 = vmul.f32 %v1010, 0.35355338
        %v1035 = vmul.f32 %v1029, 0.35355338
        %v1036 = vlaneseq
        %v1037 = vshrl.u32 %v1036, 7
        %v1038 = vlaneseq
        %v1039 = vand.u32 %v1038, 127
        %vm1040 = vcmp.le.s32.totalorder %v1039, %v1037
        %v1041 = vsel %vm1040, %v1032, -1e+30
        %v1042 = vsel %vm1040, %v1033, -1e+30
        %v1043 = vsel %vm1040, %v1034, -1e+30
        %v1044 = vsel %vm1040, %v1035, -1e+30
        %v1045 = vsel %vm955, %v1041, -inf
        %1046 = vmax.xlane.f32.xlu0 %v1045
        %v1047 = vpop.xlane.xlu0 %1046
        %v1048 = vsel %vm955, %v1042, -inf
        %1049 = vmax.xlane.f32.xlu0 %v1048
        %v1050 = vpop.xlane.xlu0 %1049
        %v1051 = vsel %vm955, %v1043, -inf
        %1052 = vmax.xlane.f32.xlu0 %v1051
        %v1053 = vpop.xlane.xlu0 %1052
        %v1054 = vsel %vm955, %v1044, -inf
        %1055 = vmax.xlane.f32.xlu0 %v1054
        %v1056 = vpop.xlane.xlu0 %1055
        %v1057 = vsub.f32 %v1041, %v1047
        %v1058 = vsub.f32 %v1042, %v1050
        %v1059 = vsub.f32 %v1043, %v1053
        %v1060 = vsub.f32 %v1044, %v1056
        %v1061 = vmul.f32 %v1057, 1.442695
        %v1062 = vpow.pop %v1061
        %v1063 = vmul.f32 %v1058, 1.442695
        %v1064 = vpow.pop %v1063
        %v1065 = vmul.f32 %v1059, 1.442695
        %v1066 = vpow.pop %v1065
        %v1067 = vmul.f32 %v1060, 1.442695
        %v1068 = vpow.pop %v1067
        %v1069 = vsel %vm955, %v1062, 0.0
        %1070 = vadd.xlane.f32.xlu0 %v1069
        %v1071 = vpop.xlane.xlu0 %1070
        %v1072 = vsel %vm955, %v1064, 0.0
        %1073 = vadd.xlane.f32.xlu0 %v1072
        %v1074 = vpop.xlane.xlu0 %1073
        %v1075 = vsel %vm955, %v1066, 0.0
        %1076 = vadd.xlane.f32.xlu0 %v1075
        %v1077 = vpop.xlane.xlu0 %1076
        %v1078 = vsel %vm955, %v1068, 0.0
        %1079 = vadd.xlane.f32.xlu0 %v1078
        %v1080 = vpop.xlane.xlu0 %1079
        %v1081 = vrcp.pop %v1071
        %v1082 = vrcp.pop %v1074
        %v1083 = vrcp.pop %v1077
        %v1084 = vrcp.pop %v1080
        %v1085 = vmul.f32 %v1062, %v1081
        %v1086 = vmul.f32 %v1064, %v1082
        %v1087 = vmul.f32 %v1066, %v1083
        %v1088 = vmul.f32 %v1068, %v1084
        %v1089 = vpack.c.bf16 %v1085, %v1085
        %v1090 = vpack.c.bf16 %v1086, %v1086
        %v1091 = vpack.c.bf16 %v1087, %v1087
        %v1092 = vpack.c.bf16 %v1088, %v1088
        %v1093 = vpack.c.bf16 %v869, %v869
        %v1094 = vpack.c.bf16 %v894, %v894
        %v1095 = vpack.c.bf16 %v919, %v919
        %v1096 = vpack.c.bf16 %v944, %v944
        %v1098 = vsel %vm955, %v1089, 0
        %vm1100 = vcmask 1043456
        %v1102 = vsel %vm1100, %v1093, 0
        %1104 = vmatpush.bf16.msra.mxu0 0
        %1105 = vmatpush.bf16.msra.mxu0 0
        %1106 = vmatpush.bf16.msra.mxu0 0
        %1107 = vmatpush.bf16.msra.mxu0 0
        %1108 = vmatpush.bf16.msra.mxu0 0
        %1109 = vmatpush.bf16.msra.mxu0 0
        %1110 = vmatpush.bf16.msra.mxu0 0
        %1111 = vmatpush.bf16.msra.mxu0 %v1102
        %1112 = vmatmul.bf16.gmra.mxu0 %v1098
        %v1113 = vpop.f32.mrf.mxu0
        %v1114 = vadd.f32 0.0, %v1113
        %v1115 = vpop.f32.mrf.mxu0
        %1116 = vdwg.mxu0
        %v1118 = vsel %vm955, %v1090, 0
        %v1121 = vsel %vm1100, %v1094, 0
        %1123 = vmatpush.bf16.msra.mxu0 0
        %1124 = vmatpush.bf16.msra.mxu0 0
        %1125 = vmatpush.bf16.msra.mxu0 0
        %1126 = vmatpush.bf16.msra.mxu0 0
        %1127 = vmatpush.bf16.msra.mxu0 0
        %1128 = vmatpush.bf16.msra.mxu0 0
        %1129 = vmatpush.bf16.msra.mxu0 0
        %1130 = vmatpush.bf16.msra.mxu0 %v1121
        %1131 = vmatmul.bf16.gmra.mxu0 %v1118
        %v1132 = vpop.f32.mrf.mxu0
        %v1133 = vadd.f32 0.0, %v1132
        %v1134 = vpop.f32.mrf.mxu0
        %1135 = vdwg.mxu0
        %v1137 = vsel %vm955, %v1091, 0
        %v1140 = vsel %vm1100, %v1095, 0
        %1142 = vmatpush.bf16.msra.mxu0 0
        %1143 = vmatpush.bf16.msra.mxu0 0
        %1144 = vmatpush.bf16.msra.mxu0 0
        %1145 = vmatpush.bf16.msra.mxu0 0
        %1146 = vmatpush.bf16.msra.mxu0 0
        %1147 = vmatpush.bf16.msra.mxu0 0
        %1148 = vmatpush.bf16.msra.mxu0 0
        %1149 = vmatpush.bf16.msra.mxu0 %v1140
        %1150 = vmatmul.bf16.gmra.mxu0 %v1137
        %v1151 = vpop.f32.mrf.mxu0
        %v1152 = vadd.f32 0.0, %v1151
        %v1153 = vpop.f32.mrf.mxu0
        %1154 = vdwg.mxu0
        %v1156 = vsel %vm955, %v1092, 0
        %v1159 = vsel %vm1100, %v1096, 0
        %1161 = vmatpush.bf16.msra.mxu0 0
        %1162 = vmatpush.bf16.msra.mxu0 0
        %1163 = vmatpush.bf16.msra.mxu0 0
        %1164 = vmatpush.bf16.msra.mxu0 0
        %1165 = vmatpush.bf16.msra.mxu0 0
        %1166 = vmatpush.bf16.msra.mxu0 0
        %1167 = vmatpush.bf16.msra.mxu0 0
        %1168 = vmatpush.bf16.msra.mxu0 %v1159
        %1169 = vmatmul.bf16.gmra.mxu0 %v1156
        %v1170 = vpop.f32.mrf.mxu0
        %v1171 = vadd.f32 0.0, %v1170
        %v1172 = vpop.f32.mrf.mxu0
        %1173 = vdwg.mxu0
        %v1174 = vpack.c.bf16 %v1114, %v1114
        %v1175 = vpack.c.bf16 %v1133, %v1133
        %v1176 = vpack.c.bf16 %v1152, %v1152
        %v1177 = vpack.c.bf16 %v1171, %v1171
        %v1178 = vld [vmem:[%s7] sm:$0xf]
        %v1179 = vld [vmem:[%s7 + $0x4] sm:$0xf]
        %v1180 = vld [vmem:[%s7 + $0x8] sm:$0xf]
        %v1181 = vld [vmem:[%s7 + $0xc] sm:$0xf]
        %v1183 = vsel %vm955, %v1174, 0
        %v1186 = vsel %vm1100, %v1178, 0
        %1188 = vmatpush.bf16.msra.mxu0 0
        %1189 = vmatpush.bf16.msra.mxu0 0
        %1190 = vmatpush.bf16.msra.mxu0 0
        %1191 = vmatpush.bf16.msra.mxu0 0
        %1192 = vmatpush.bf16.msra.mxu0 0
        %1193 = vmatpush.bf16.msra.mxu0 0
        %1194 = vmatpush.bf16.msra.mxu0 0
        %1195 = vmatpush.bf16.msra.mxu0 %v1186
        %1196 = vmatmul.bf16.gmra.mxu0 %v1183
        %v1197 = vpop.f32.mrf.mxu0
        %v1198 = vadd.f32 0.0, %v1197
        %v1199 = vpop.f32.mrf.mxu0
        %1200 = vdwg.mxu0
        %v1202 = vsel %vm955, %v1175, 0
        %v1205 = vsel %vm1100, %v1179, 0
        %1207 = vmatpush.bf16.msra.mxu0 0
        %1208 = vmatpush.bf16.msra.mxu0 0
        %1209 = vmatpush.bf16.msra.mxu0 0
        %1210 = vmatpush.bf16.msra.mxu0 0
        %1211 = vmatpush.bf16.msra.mxu0 0
        %1212 = vmatpush.bf16.msra.mxu0 0
        %1213 = vmatpush.bf16.msra.mxu0 0
        %1214 = vmatpush.bf16.msra.mxu0 %v1205
        %1215 = vmatmul.bf16.gmra.mxu0 %v1202
        %v1216 = vpop.f32.mrf.mxu0
        %v1217 = vadd.f32 0.0, %v1216
        %v1218 = vpop.f32.mrf.mxu0
        %1219 = vdwg.mxu0
        %v1221 = vsel %vm955, %v1176, 0
        %v1224 = vsel %vm1100, %v1180, 0
        %1226 = vmatpush.bf16.msra.mxu0 0
        %1227 = vmatpush.bf16.msra.mxu0 0
        %1228 = vmatpush.bf16.msra.mxu0 0
        %1229 = vmatpush.bf16.msra.mxu0 0
        %1230 = vmatpush.bf16.msra.mxu0 0
        %1231 = vmatpush.bf16.msra.mxu0 0
        %1232 = vmatpush.bf16.msra.mxu0 0
        %1233 = vmatpush.bf16.msra.mxu0 %v1224
        %1234 = vmatmul.bf16.gmra.mxu0 %v1221
        %v1235 = vpop.f32.mrf.mxu0
        %v1236 = vadd.f32 0.0, %v1235
        %v1237 = vpop.f32.mrf.mxu0
        %1238 = vdwg.mxu0
        %v1240 = vsel %vm955, %v1177, 0
        %v1243 = vsel %vm1100, %v1181, 0
        %1245 = vmatpush.bf16.msra.mxu0 0
        %1246 = vmatpush.bf16.msra.mxu0 0
        %1247 = vmatpush.bf16.msra.mxu0 0
        %1248 = vmatpush.bf16.msra.mxu0 0
        %1249 = vmatpush.bf16.msra.mxu0 0
        %1250 = vmatpush.bf16.msra.mxu0 0
        %1251 = vmatpush.bf16.msra.mxu0 0
        %1252 = vmatpush.bf16.msra.mxu0 %v1243
        %1253 = vmatmul.bf16.gmra.mxu0 %v1240
        %v1254 = vpop.f32.mrf.mxu0
        %v1255 = vadd.f32 0.0, %v1254
        %v1256 = vpop.f32.mrf.mxu0
        %1257 = vdwg.mxu0
        %v1258 = vsel %vm591, %v1198, 0.0
        %v1259 = vsel %vm591, %v1217, 0.0
        %v1260 = vadd.f32 %v1258, %v1259
        %v1261 = vsel %vm591, %v1236, 0.0
        %v1262 = vadd.f32 %v1260, %v1261
        %v1263 = vsel %vm591, %v1255, 0.0
        %v1264 = vadd.f32 %v1262, %v1263
        %v1265 = vld [vmem:[%s8] sm:$0x1]
        %v1267 = vperm.slane %v1265, 0
        %v1269 = vadd.f32 %v1264, %v1267
        %v1270 = vadd.f32 %v545, %v1269
        %v1271 = vsel %vm591, %v1270, 0.0
        %1272 = vadd.xlane.f32.xlu0 %v1271
        %v1273 = vpop.xlane.xlu0 %1272
        %v1274 = vrcp.pop 32.0
        %v1275 = vmul.f32 32.0, %v1274
        %v1276 = vsub.f32 1.0, %v1275
        %v1277 = vmul.f32 %v1274, %v1276
        %v1278 = vadd.f32 %v1274, %v1277
        %vm1279 = vweird.f32 %v1274
        %v1280 = vsel %vm1279, %v1274, %v1278
        %v1281 = vmul.f32 %v1273, %v1280
        %v1282 = vsub.f32 %v1270, %v1281
        %v1283 = vmul.f32 %v1282, %v1282
        %v1284 = vsel %vm591, %v1283, 0.0
        %1285 = vadd.xlane.f32.xlu0 %v1284
        %v1286 = vpop.xlane.xlu0 %1285
        %v1287 = vmul.f32 %v1286, %v1280
        %v1288 = vadd.f32 %v1287, 1e-05
        %v1289 = vrsqrt.pop %v1288
        %v1290 = vmul.f32 %v1289, %v1288
        %v1291 = vmul.f32 %v1290, %v1289
        %v1292 = vmul.f32 0.5, %v1291
        %v1293 = vsub.f32 1.5, %v1292
        %v1294 = vmul.f32 %v1289, %v1293
        %vm1295 = vweird.f32 %v1288
        %vm1296 = vweird.f32 %v1289
        %vm1297 = vmor %vm1295, %vm1296
        %v1298 = vsel %vm1297, %v1289, %v1294
        %v1299 = vmul.f32 %v1282, %v1298
        %v1300 = vld [vmem:[%s9] sm:$0x1]
        %v1302 = vperm.slane %v1300, 0
        %v1304 = vmul.f32 %v1299, %v1302
        %v1305 = vld [vmem:[%s10] sm:$0x1]
        %v1307 = vperm.slane %v1305, 0
        %v1309 = vadd.f32 %v1304, %v1307
        %v1310 = vpack.c.bf16 %v1309, %v1309
        %v1311 = vld [vmem:[%s11] sm:$0xf]
        %v1312 = vld [vmem:[%s11 + $0x4] sm:$0xf]
        %v1313 = vld [vmem:[%s11 + $0x8] sm:$0xf]
        %v1314 = vld [vmem:[%s11 + $0xc] sm:$0xf]
        %v1315 = vld [vmem:[%s12] sm:$0x1]
        %v1317 = vperm.slane %v1315, 0
        %v1323 = vunpack.c.l.b16 %v1311
        %v1324 = vunpack.c.l.b16 %v1312
        %v1325 = vunpack.c.l.b16 %v1313
        %v1326 = vunpack.c.l.b16 %v1314
        %v1327 = vpack.c.b16 %v1324, %v1323
        %v1328 = vpack.c.b16 %v1326, %v1325
        %v1332 = vsel %vm591, %v1310, 0
        %1334 = vmatpush.bf16.msra.mxu0 0
        %1335 = vmatpush.bf16.msra.mxu0 0
        %1336 = vmatpush.bf16.msra.mxu0 0
        %1337 = vmatpush.bf16.msra.mxu0 0
        %1338 = vmatpush.bf16.msra.mxu0 0
        %1339 = vmatpush.bf16.msra.mxu0 0
        %1340 = vmatpush.bf16.msra.mxu0 %v1328
        %1341 = vmatpush.bf16.msra.mxu0 %v1327
        %1342 = vmatmul.bf16.gmra.mxu0 %v1332
        %v1343 = vpop.f32.mrf.mxu0
        %v1344 = vadd.f32 %v1317, %v1343
        %v1345 = vpop.f32.mrf.mxu0
        %1346 = vdwg.mxu0
        %v1347 = vmul.f32 %v1344, 0.5
        %v1348 = vmul.f32 %v1344, 0.70710677
        %v1349 = vmul.f32 %v1348, %v1348
        %v1350 = vmin.f32 16.0, %v1349
        %v1351 = vmul.f32 %v1350, 2.1237322e-06
        %v1352 = vadd.f32 %v1351, 0.00028619796
        %v1353 = vmul.f32 %v1350, %v1352
        %v1354 = vadd.f32 %v1353, 0.0036580483
        %v1355 = vmul.f32 %v1350, %v1354
        %v1356 = vadd.f32 %v1355, 0.05243302
        %v1357 = vmul.f32 %v1350, %v1356
        %v1358 = vadd.f32 %v1357, 0.18741608
        %v1359 = vmul.f32 %v1350, %v1358
        %v1360 = vadd.f32 %v1359, 1.1283791
        %v1361 = vmul.f32 %v1348, %v1360
        %v1362 = vmul.f32 %v1350, 3.8918573e-05
        %v1363 = vadd.f32 %v1362, 0.001143296
        %v1364 = vmul.f32 %v1350, %v1363
        %v1365 = vadd.f32 %v1364, 0.014752088
        %v1366 = vmul.f32 %v1350, %v1365
        %v1367 = vadd.f32 %v1366, 0.112945676
        %v1368 = vmul.f32 %v1350, %v1367
        %v1369 = vadd.f32 %v1368, 0.4994258
        %v1370 = vmul.f32 %v1350, %v1369
        %v1371 = vadd.f32 %v1370, 1.0
        %v1372 = vrcp.pop %v1371
        %v1373 = vmul.f32 %v1371, %v1372
        %v1374 = vsub.f32 1.0, %v1373
        %v1375 = vmul.f32 %v1372, %v1374
        %v1376 = vadd.f32 %v1372, %v1375
        %vm1377 = vweird.f32 %v1371
        %vm1378 = vweird.f32 %v1372
        %vm1379 = vmor %vm1377, %vm1378
        %v1380 = vsel %vm1379, %v1372, %v1376
        %v1381 = vand.u32 2147483647, %v1371
        %vm1382 = vcmp.eq.f32.partialorder %v1381, 8.507059e+37
        %v1383 = vand.u32 %v1371, 2147483648
        %v1384 = vor.u32 1.1754944e-38, %v1383
        %v1385 = vsel %vm1382, %v1384, %v1380
        %v1386 = vmul.f32 %v1361, %v1385
        %v1387 = vmin.f32 %v1386, 1.0
        %v1388 = vmax.f32 %v1387, -1.0
        %v1389 = vadd.f32 %v1388, 1.0
        %v1390 = vmul.f32 %v1347, %v1389
        %v1391 = vpack.c.bf16 %v1390, %v1390
        %v1392 = vld [vmem:[%s13] sm:$0xf]
        %v1393 = vld [vmem:[%s13 + $0x4] sm:$0xf]
        %v1394 = vld [vmem:[%s13 + $0x8] sm:$0xf]
        %v1395 = vld [vmem:[%s13 + $0xc] sm:$0xf]
        %v1396 = vld [vmem:[%s13 + $0x10] sm:$0xf]
        %v1397 = vld [vmem:[%s13 + $0x14] sm:$0xf]
        %v1398 = vld [vmem:[%s13 + $0x18] sm:$0xf]
        %v1399 = vld [vmem:[%s13 + $0x1c] sm:$0xf]
        %v1400 = vld [vmem:[%s13 + $0x20] sm:$0xf]
        %v1401 = vld [vmem:[%s13 + $0x24] sm:$0xf]
        %v1402 = vld [vmem:[%s13 + $0x28] sm:$0xf]
        %v1403 = vld [vmem:[%s13 + $0x2c] sm:$0xf]
        %v1404 = vld [vmem:[%s13 + $0x30] sm:$0xf]
        %v1405 = vld [vmem:[%s13 + $0x34] sm:$0xf]
        %v1406 = vld [vmem:[%s13 + $0x38] sm:$0xf]
        %v1407 = vld [vmem:[%s13 + $0x3c] sm:$0xf]
        %v1408 = vld [vmem:[%s14] sm:$0x1]
        %v1410 = vperm.slane %v1408, 0
        %v1428 = vunpack.c.l.b16 %v1392
        %v1429 = vunpack.c.l.b16 %v1393
        %v1430 = vunpack.c.l.b16 %v1394
        %v1431 = vunpack.c.l.b16 %v1395
        %v1432 = vunpack.c.l.b16 %v1396
        %v1433 = vunpack.c.l.b16 %v1397
        %v1434 = vunpack.c.l.b16 %v1398
        %v1435 = vunpack.c.l.b16 %v1399
        %v1436 = vunpack.c.l.b16 %v1400
        %v1437 = vunpack.c.l.b16 %v1401
        %v1438 = vunpack.c.l.b16 %v1402
        %v1439 = vunpack.c.l.b16 %v1403
        %v1440 = vunpack.c.l.b16 %v1404
        %v1441 = vunpack.c.l.b16 %v1405
        %v1442 = vunpack.c.l.b16 %v1406
        %v1443 = vunpack.c.l.b16 %v1407
        %v1444 = vpack.c.b16 %v1429, %v1428
        %v1445 = vpack.c.b16 %v1431, %v1430
        %v1446 = vpack.c.b16 %v1433, %v1432
        %v1447 = vpack.c.b16 %v1435, %v1434
        %v1448 = vpack.c.b16 %v1437, %v1436
        %v1449 = vpack.c.b16 %v1439, %v1438
        %v1450 = vpack.c.b16 %v1441, %v1440
        %v1451 = vpack.c.b16 %v1443, %v1442
        %1460 = vmatpush.bf16.msra.mxu0 %v1451
        %1461 = vmatpush.bf16.msra.mxu0 %v1450
        %1462 = vmatpush.bf16.msra.mxu0 %v1449
        %1463 = vmatpush.bf16.msra.mxu0 %v1448
        %1464 = vmatpush.bf16.msra.mxu0 %v1447
        %1465 = vmatpush.bf16.msra.mxu0 %v1446
        %1466 = vmatpush.bf16.msra.mxu0 %v1445
        %1467 = vmatpush.bf16.msra.mxu0 %v1444
        %1468 = vmatmul.bf16.gmra.mxu0 %v1391
        %v1469 = vpop.f32.mrf.mxu0
        %v1470 = vadd.f32 %v1410, %v1469
        %v1471 = vpop.f32.mrf.mxu0
        %1472 = vdwg.mxu0
        %v1473 = vadd.f32 %v1309, %v1470
        %v1474 = vsel %vm591, %v1473, 0.0
        %1475 = vadd.xlane.f32.xlu0 %v1474
        %v1476 = vpop.xlane.xlu0 %1475
        %v1477 = vmul.f32 %v1476, %v1280
        %v1478 = vsub.f32 %v1473, %v1477
        %v1479 = vmul.f32 %v1478, %v1478
        %v1480 = vsel %vm591, %v1479, 0.0
        %1481 = vadd.xlane.f32.xlu0 %v1480
        %v1482 = vpop.xlane.xlu0 %1481
        %v1483 = vmul.f32 %v1482, %v1280
        %v1484 = vadd.f32 %v1483, 1e-05
        %v1485 = vrsqrt.pop %v1484
        %v1486 = vmul.f32 %v1485, %v1484
        %v1487 = vmul.f32 %v1486, %v1485
        %v1488 = vmul.f32 0.5, %v1487
        %v1489 = vsub.f32 1.5, %v1488
        %v1490 = vmul.f32 %v1485, %v1489
        %vm1491 = vweird.f32 %v1484
        %vm1492 = vweird.f32 %v1485
        %vm1493 = vmor %vm1491, %vm1492
        %v1494 = vsel %vm1493, %v1485, %v1490
        %v1495 = vmul.f32 %v1478, %v1494
        %v1496 = vld [vmem:[%s15] sm:$0x1]
        %v1498 = vperm.slane %v1496, 0
        %v1500 = vmul.f32 %v1495, %v1498
        %v1501 = vld [vmem:[%s16] sm:$0x1]
        %v1503 = vperm.slane %v1501, 0
        %v1505 = vadd.f32 %v1500, %v1503
        %1506 = vst.msk [vmem:[%s539] sm:$0xff] %vm591, %v1505
        %s1507 = sand.u32 %s401, 1
        %s1508 = scalar_lea.sflag [#allocation3], %s1507
        %s1509 = sand.u32 %s401, 1
        %s1510 = smul.addr %s1509, 8
        %s1511 = scalar_lea.vmem [#allocation2], %s1510
        // Predicated region
        $region89: #{tpu_custom_call.1} parent=87 // pred_check
          %p1512 = pneg %p411
        $region90: #{tpu_custom_call.1} parent=87 // pred_check_branch
          %1514 = sbr.rel (%p1512) target = $region92
        $region91: #{tpu_custom_call.1} parent=87 // pred_region
          %1516 = vsyncadd %s1508, 0
          %s1517 = smul.addr %s31, 8
          %s1518 = scalar_lea.hbm %s17, %s1517
          %s1520 = sshll.u32 %s1511, 4
          %s1521 = int_to_ptr.vmem [resolvable:$true] %s1520
          %s1522 = sshll.u32 %s1518, 4
          %s1523 = int_to_ptr.hbm [resolvable:$true] %s1522
          %1525 = dma.vmem_to_hbm [thread:$0]  %s1521, 128, %s1523, %s1508
        $region92: #{tpu_custom_call.1} parent=87 // pred_fallthru
          _
      $region88: #{tpu_custom_call.1} parent=5 // pred_fallthru
        _
      %p1526 = scmp.le.s32.totalorder 2, %s26
      // Predicated region
      $region93: #{tpu_custom_call.1} parent=5 // pred_check
        %p1527 = pneg %p1526
      $region94: #{tpu_custom_call.1} parent=5 // pred_check_branch
        %1529 = sbr.rel (%p1527) target = $region96
      $region95: #{tpu_custom_call.1} parent=5 // pred_region
        %s1530 = ssub.s32 %s26, 2
        // Predicated region
        $region97: #{tpu_custom_call.1} parent=95 // pred_check
          %p1531 = pneg %p417
        $region98: #{tpu_custom_call.1} parent=95 // pred_check_branch
          %1533 = sbr.rel (%p1531) target = $region100
        $region99: #{tpu_custom_call.1} parent=95 // pred_region
          %s1534 = sand.u32 %s402, 1
          %s1535 = scalar_lea.sflag [#allocation3], %s1534
          %s1536 = sand.u32 %s402, 1
          %s1537 = smul.addr %s1536, 8
          %s1538 = scalar_lea.vmem [#allocation2], %s1537
          %1540 = dma.done %s1535, 128
        $region100: #{tpu_custom_call.1} parent=95 // pred_fallthru
          _
      $region96: #{tpu_custom_call.1} parent=5 // pred_fallthru
        _
    $region6: #{tpu_custom_call.1} parent=1 // loop_footer
      %s30 = sadd.s32 1, %s26
    $region7: #{tpu_custom_call.1} parent=1 // loop_footer_branch
      %25 = sbr.rel target = $region3
    $region8: #{tpu_custom_call.1} parent=1 // loop_exit
      _
    %1541 = vsyncpa [#allocation3], 1
    %s1542 = scalar_lea.sflag [#allocation3], 1
    %1543 = vsyncpa %s1542, 1

</llo_original>
